<compile_context>
chip_gen: v7x
topology: tpu7x:2x2x1
jax: 0.10.0
libtpu: 0.0.40
codegen_flags: <defaults>
</compile_context>

<pallas_src>
import functools

import jax
import jax.numpy as jnp
import numpy as np
from jax.experimental import pallas as pl
from jax.experimental.pallas import tpu as pltpu

EPS = 1e-5  # nn.LayerNorm default


def _layernorm(y, gamma, beta):
    mu = jnp.mean(y, axis=-1, keepdims=True)
    var = jnp.mean((y - mu) ** 2, axis=-1, keepdims=True)
    return (y - mu) * jax.lax.rsqrt(var + EPS) * gamma + beta


def fnet_block_kernel(x_ref, css_ref, cdsd_ref,
                      g1_ref, bt1_ref, w1_ref, b1_ref, w2_ref, b2_ref,
                      g2_ref, bt2_ref, o_ref, *, tile_s):
    T = tile_s

    # --- Fourier sublayer: real part of 2-D orthonormal FFT (2 fused matmuls)
    x_bf = x_ref[...].astype(jnp.bfloat16)                    # (S, D)
    ab = jnp.dot(css_ref[...], x_bf,
                 preferred_element_type=jnp.float32)          # (2T, D) f32
    ab = ab.astype(jnp.bfloat16)
    a_cat_b = jnp.concatenate([ab[:T], ab[T:]], axis=-1)      # (T, 2D)
    re = jnp.dot(a_cat_b, cdsd_ref[...],
                 preferred_element_type=jnp.float32)          # (T, D) f32

    # residual rows of x for this sequence tile
    row0 = pl.multiple_of(pl.program_id(1) * T, T)
    xr = x_ref[pl.ds(row0, T), :].astype(jnp.float32)         # (T, D)

    # residual + LayerNorm1 (dropout = identity in eval mode)
    y = _layernorm(xr + re, g1_ref[...], bt1_ref[...])        # (T, D)

    # --- FeedForward: fc2(relu(fc1(y))), bf16 operands / f32 accumulation
    h = jnp.dot(y.astype(jnp.bfloat16), w1_ref[...],
                preferred_element_type=jnp.float32) + b1_ref[...]
    h = jnp.maximum(h, 0.0)                                   # ReLU
    ffn = jnp.dot(h.astype(jnp.bfloat16), w2_ref[...],
                  preferred_element_type=jnp.float32) + b2_ref[...]

    # residual + LayerNorm2
    out = _layernorm(y + ffn, g2_ref[...], bt2_ref[...])      # (T, D)
    o_ref[...] = out.astype(o_ref.dtype)


def make_fourier_mats(S, D, tile_s, dtype=jnp.bfloat16):
    """Precompute stacked DFT factor matrices (passed as runtime args so they
    are not baked into the jitted executable as HLO constants)."""
    # TODO(synk): exploit real-input FFT half-spectrum symmetry to halve the
    # DFT matmul FLOPs/footprint (gate behind a re-validated tolerance check).
    js = np.arange(S)
    jd = np.arange(D)
    ang_s = -2.0 * np.pi * np.outer(js, js) / S
    ang_d = -2.0 * np.pi * np.outer(jd, jd) / D
    cs = np.cos(ang_s) / np.sqrt(S)
    ss = np.sin(ang_s) / np.sqrt(S)
    cd = np.cos(ang_d) / np.sqrt(D)
    sd = np.sin(ang_d) / np.sqrt(D)
    n_tiles = S // tile_s
    # css[t] = [Cs rows of tile t ; Ss rows of tile t]  -> (n_tiles, 2T, S)
    css = np.concatenate([cs.reshape(n_tiles, tile_s, S),
                          ss.reshape(n_tiles, tile_s, S)], axis=1)
    cdsd = np.concatenate([cd, -sd], axis=0)                  # (2D, D)
    return jnp.asarray(css, dtype), jnp.asarray(cdsd, dtype)


@functools.partial(jax.jit, static_argnames=("tile_s",))
def fnet_block(x, params, css, cdsd, *, tile_s=128):
    B, S, D = x.shape
    H = params["w1"].shape[1]
    T = tile_s
    assert S % T == 0, "tile_s must divide S"
    assert T % 8 == 0, "tile_s must be a multiple of 8 (sublane tiling)"
    n_s = S // T

    # bf16 MXU operands (accumulation stays f32 inside the kernel)
    w1 = params["w1"].astype(jnp.bfloat16)
    w2 = params["w2"].astype(jnp.bfloat16)

    # --- explicit VMEM budget: per-step tiles (double-buffered) + scratch
    bf, f32 = 2, 4
    per_step = (S * D * f32                      # x slab
                + 2 * T * S * bf                 # [Cs;Ss] row panel
                + 2 * D * D * bf                 # [Cd;-Sd]
                + (D * H + H * D) * bf           # W1, W2
                + (H + 5 * D) * f32              # biases + LayerNorm params
                + T * D * f32)                   # output tile
    scratch = (2 * T * D + 2 * T * D + 6 * T * D + 2 * T * H) * f32
    vmem_limit = int(min(64 * 2 ** 20,
                         max(32 * 2 ** 20, 2 * per_step + scratch + (4 << 20))))
    # TODO(synk): pin grid-invariant operands to one buffer via
    # pipeline_mode=pl.Buffered(1) once verified on the target jax version;
    # further shrinks resident VMEM on v7x (64 MiB) at production shapes.

    cost = pl.CostEstimate(
        flops=4 * B * S * D * (S + D + H),
        transcendentals=2 * B * S,               # one rsqrt per LayerNorm row
        bytes_accessed=int(2 * B * S * D * f32 + css.size * bf + cdsd.size * bf
                           + (D * H + H * D) * bf + (H + 5 * D) * f32))

    inv = lambda shape: pl.BlockSpec(shape, lambda b, s: (0,) * len(shape))

    return pl.pallas_call(
        functools.partial(fnet_block_kernel, tile_s=T),
        out_shape=jax.ShapeDtypeStruct((B, S, D), x.dtype),
        grid_spec=pltpu.PrefetchScalarGridSpec(
            num_scalar_prefetch=0,
            grid=(B, n_s),
            in_specs=[
                pl.BlockSpec((pl.Squeezed(), S, D), lambda b, s: (b, 0, 0)),      # x
                pl.BlockSpec((pl.Squeezed(), 2 * T, S), lambda b, s: (s, 0, 0)),  # [Cs;Ss]
                inv((2 * D, D)),                                                  # [Cd;-Sd]
                inv((1, D)), inv((1, D)),                                         # gamma1, beta1
                inv((D, H)), inv((1, H)),                                         # W1, b1
                inv((H, D)), inv((1, D)),                                         # W2, b2
                inv((1, D)), inv((1, D)),                                         # gamma2, beta2
            ],
            out_specs=pl.BlockSpec((pl.Squeezed(), T, D), lambda b, s: (b, s, 0)),
        ),
        compiler_params=pltpu.CompilerParams(
            dimension_semantics=("parallel", "parallel"),
            vmem_limit_bytes=vmem_limit),
        cost_estimate=cost,
    )(x, css, cdsd,
      params["g1"], params["bt1"],
      w1, params["b1"],
      w2, params["b2"],
      params["g2"], params["bt2"])


def reference(x, params):
    """Pure-JAX f32 reference matching the PyTorch module (eval mode)."""
    x = x.astype(jnp.float32)
    four = jnp.real(jnp.fft.fft2(x, norm="ortho"))
    y = _layernorm(x + four, params["g1"], params["bt1"])
    h = jnp.maximum(y @ params["w1"] + params["b1"], 0.0)
    ffn = h @ params["w2"] + params["b2"]
    return _layernorm(y + ffn, params["g2"], params["bt2"])


def init_params(key, d_model, hidden_dim):
    k1, k2 = jax.random.split(key)
    return {
        # LayerNorm defaults: weight=1, bias=0
        "g1": jnp.ones((1, d_model), jnp.float32),
        "bt1": jnp.zeros((1, d_model), jnp.float32),
        "g2": jnp.ones((1, d_model), jnp.float32),
        "bt2": jnp.zeros((1, d_model), jnp.float32),
        # Linear weights, stored pre-transposed for row-major matmul:
        # fc1: (d_model, hidden), fc2: (hidden, d_model)
        "w1": 0.05 * jax.random.normal(k1, (d_model, hidden_dim), jnp.float32),
        "b1": jnp.zeros((1, hidden_dim), jnp.float32),
        "w2": 0.05 * jax.random.normal(k2, (hidden_dim, d_model), jnp.float32),
        "b2": jnp.zeros((1, d_model), jnp.float32),
    }


if __name__ == "__main__":
    # Small but tile-aligned shapes (lane dims multiples of 128) so the test
    # exercises representative, unmasked codepaths.
    B, S, D, H = 2, 256, 128, 256
    TILE_S = 128

    key = jax.random.PRNGKey(0)
    kx, kp = jax.random.split(key)
    x = jax.random.normal(kx, (B, S, D), jnp.float32)
    params = init_params(kp, D, H)
    css, cdsd = make_fourier_mats(S, D, TILE_S)

    out = fnet_block(x, params, css, cdsd, tile_s=TILE_S)
    out = jax.block_until_ready(out)

    ref = reference(x, params)
    # bf16 MXU operands (f32 accumulation) vs. the pure-f32 fft2 reference:
    # bf16-level tolerance.
    np.testing.assert_allclose(np.asarray(out), np.asarray(ref),
                               rtol=5e-2, atol=5e-2)
    print("KERNEL_OK")
</pallas_src>

<mosaic_0001>
module attributes {stable_mosaic.version = 11 : i64} {
  func.func @fnet_block_kernel(%arg0: i32, %arg1: i32, %arg2: memref<1x256x128xf32, #tpu.memory_space<vmem>>, %arg3: memref<1x256x256xbf16, #tpu.memory_space<vmem>>, %arg4: memref<256x128xbf16, #tpu.memory_space<vmem>>, %arg5: memref<1x128xf32, #tpu.memory_space<vmem>>, %arg6: memref<1x128xf32, #tpu.memory_space<vmem>>, %arg7: memref<128x256xbf16, #tpu.memory_space<vmem>>, %arg8: memref<1x256xf32, #tpu.memory_space<vmem>>, %arg9: memref<256x128xbf16, #tpu.memory_space<vmem>>, %arg10: memref<1x128xf32, #tpu.memory_space<vmem>>, %arg11: memref<1x128xf32, #tpu.memory_space<vmem>>, %arg12: memref<1x128xf32, #tpu.memory_space<vmem>>, %arg13: memref<1x128x128xf32, #tpu.memory_space<vmem>>) attributes {dimension_semantics = [#tpu.dimension_semantics<parallel>, #tpu.dimension_semantics<parallel>], iteration_bounds = array<i64: 2, 2>, scalar_prefetch = 0 : i64, scratch_operands = 0 : i64, tpu.core_type = #tpu.core_type<tc>, window_params = [{transform_indices = @transform_0, window_bounds = array<i64: 1, 256, 128>}, {transform_indices = @transform_1, window_bounds = array<i64: 1, 256, 256>}, {pipeline_mode = #tpu.pipeline_mode<synchronous>, transform_indices = @transform_2, window_bounds = array<i64: 256, 128>}, {pipeline_mode = #tpu.pipeline_mode<synchronous>, transform_indices = @transform_3, window_bounds = array<i64: 1, 128>}, {pipeline_mode = #tpu.pipeline_mode<synchronous>, transform_indices = @transform_4, window_bounds = array<i64: 1, 128>}, {pipeline_mode = #tpu.pipeline_mode<synchronous>, transform_indices = @transform_5, window_bounds = array<i64: 128, 256>}, {pipeline_mode = #tpu.pipeline_mode<synchronous>, transform_indices = @transform_6, window_bounds = array<i64: 1, 256>}, {pipeline_mode = #tpu.pipeline_mode<synchronous>, transform_indices = @transform_7, window_bounds = array<i64: 256, 128>}, {pipeline_mode = #tpu.pipeline_mode<synchronous>, transform_indices = @transform_8, window_bounds = array<i64: 1, 128>}, {pipeline_mode = #tpu.pipeline_mode<synchronous>, transform_indices = @transform_9, window_bounds = array<i64: 1, 128>}, {pipeline_mode = #tpu.pipeline_mode<synchronous>, transform_indices = @transform_10, window_bounds = array<i64: 1, 128>}, {transform_indices = @transform_11, window_bounds = array<i64: 1, 128, 128>}]} {
    %c0 = arith.constant 0 : index
    %c0_0 = arith.constant 0 : index
    %c0_1 = arith.constant 0 : index
    %0 = vector.load %arg2[%c0, %c0_0, %c0_1] : memref<1x256x128xf32, #tpu.memory_space<vmem>>, vector<1x256x128xf32>
    %1 = vector.shape_cast %0 : vector<1x256x128xf32> to vector<256x128xf32>
    %2 = arith.truncf %1 : vector<256x128xf32> to vector<256x128xbf16>
    %c0_2 = arith.constant 0 : index
    %c0_3 = arith.constant 0 : index
    %c0_4 = arith.constant 0 : index
    %3 = vector.load %arg3[%c0_2, %c0_3, %c0_4] : memref<1x256x256xbf16, #tpu.memory_space<vmem>>, vector<1x256x256xbf16>
    %4 = vector.shape_cast %3 : vector<1x256x256xbf16> to vector<256x256xbf16>
    %cst = arith.constant dense<0.000000e+00> : vector<256x128xf32>
    %5 = tpu.matmul %4, %2, %cst {dimension_numbers = #tpu.dot_dimension_numbers<[1], [0], [0], [1], [0, 0, 1, 1], [], []>} : vector<256x256xbf16>, vector<256x128xbf16>, vector<256x128xf32> -> vector<256x128xf32>
    %6 = arith.truncf %5 : vector<256x128xf32> to vector<256x128xbf16>
    %7 = vector.extract_strided_slice %6 {offsets = [0, 0], sizes = [128, 128], strides = [1, 1]} : vector<256x128xbf16> to vector<128x128xbf16>
    %8 = vector.extract_strided_slice %6 {offsets = [128, 0], sizes = [128, 128], strides = [1, 1]} : vector<256x128xbf16> to vector<128x128xbf16>
    %9 = tpu.concatenate %7, %8 in 1 : vector<128x128xbf16>, vector<128x128xbf16> -> vector<128x256xbf16>
    %c0_5 = arith.constant 0 : index
    %c0_6 = arith.constant 0 : index
    %10 = vector.load %arg4[%c0_5, %c0_6] : memref<256x128xbf16, #tpu.memory_space<vmem>>, vector<256x128xbf16>
    %cst_7 = arith.constant dense<0.000000e+00> : vector<128x128xf32>
    %11 = tpu.matmul %9, %10, %cst_7 {dimension_numbers = #tpu.dot_dimension_numbers<[1], [0], [0], [1], [0, 0, 1, 1], [], []>} : vector<128x256xbf16>, vector<256x128xbf16>, vector<128x128xf32> -> vector<128x128xf32>
    %c128_i32 = arith.constant 128 : i32
    %12 = arith.muli %arg1, %c128_i32 : i32
    %13 = tpu.assume_multiple %12, 128 : i32
    %c0_8 = arith.constant 0 : index
    %14 = arith.index_cast %13 : i32 to index
    %c0_9 = arith.constant 0 : index
    %15 = vector.load %arg2[%c0_8, %14, %c0_9] : memref<1x256x128xf32, #tpu.memory_space<vmem>>, vector<1x128x128xf32>
    %16 = vector.shape_cast %15 : vector<1x128x128xf32> to vector<128x128xf32>
    %17 = arith.addf %16, %11 : vector<128x128xf32>
    %c0_10 = arith.constant 0 : index
    %c0_11 = arith.constant 0 : index
    %18 = vector.load %arg5[%c0_10, %c0_11] : memref<1x128xf32, #tpu.memory_space<vmem>>, vector<1x128xf32>
    %c0_12 = arith.constant 0 : index
    %c0_13 = arith.constant 0 : index
    %19 = vector.load %arg6[%c0_12, %c0_13] : memref<1x128xf32, #tpu.memory_space<vmem>>, vector<1x128xf32>
    %cst_14 = arith.constant dense<0.000000e+00> : vector<128xf32>
    %20 = vector.multi_reduction <add>, %17, %cst_14 [1] : vector<128x128xf32> to vector<128xf32>
    %21 = vector.shape_cast %20 : vector<128xf32> to vector<128x1xf32>
    %cst_15 = arith.constant 1.280000e+02 : f32
    %22 = vector.broadcast %cst_15 : f32 to vector<128x1xf32>
    %23 = arith.divf %21, %22 : vector<128x1xf32>
    %24 = vector.broadcast %23 : vector<128x1xf32> to vector<128x128xf32>
    %25 = arith.subf %17, %24 : vector<128x128xf32>
    %26 = arith.mulf %25, %25 : vector<128x128xf32>
    %cst_16 = arith.constant dense<0.000000e+00> : vector<128xf32>
    %27 = vector.multi_reduction <add>, %26, %cst_16 [1] : vector<128x128xf32> to vector<128xf32>
    %28 = vector.shape_cast %27 : vector<128xf32> to vector<128x1xf32>
    %cst_17 = arith.constant 1.280000e+02 : f32
    %29 = vector.broadcast %cst_17 : f32 to vector<128x1xf32>
    %30 = arith.divf %28, %29 : vector<128x1xf32>
    %31 = vector.broadcast %23 : vector<128x1xf32> to vector<128x128xf32>
    %32 = arith.subf %17, %31 : vector<128x128xf32>
    %cst_18 = arith.constant 9.99999974E-6 : f32
    %33 = vector.broadcast %cst_18 : f32 to vector<128x1xf32>
    %34 = arith.addf %30, %33 : vector<128x1xf32>
    %35 = math.rsqrt %34 : vector<128x1xf32>
    %36 = vector.broadcast %35 : vector<128x1xf32> to vector<128x128xf32>
    %37 = arith.mulf %32, %36 : vector<128x128xf32>
    %38 = vector.broadcast %18 : vector<1x128xf32> to vector<128x128xf32>
    %39 = arith.mulf %37, %38 : vector<128x128xf32>
    %40 = vector.broadcast %19 : vector<1x128xf32> to vector<128x128xf32>
    %41 = arith.addf %39, %40 : vector<128x128xf32>
    %42 = arith.truncf %41 : vector<128x128xf32> to vector<128x128xbf16>
    %c0_19 = arith.constant 0 : index
    %c0_20 = arith.constant 0 : index
    %43 = vector.load %arg7[%c0_19, %c0_20] : memref<128x256xbf16, #tpu.memory_space<vmem>>, vector<128x256xbf16>
    %cst_21 = arith.constant dense<0.000000e+00> : vector<128x256xf32>
    %44 = tpu.matmul %42, %43, %cst_21 {dimension_numbers = #tpu.dot_dimension_numbers<[1], [0], [0], [1], [0, 0, 1, 1], [], []>} : vector<128x128xbf16>, vector<128x256xbf16>, vector<128x256xf32> -> vector<128x256xf32>
    %c0_22 = arith.constant 0 : index
    %c0_23 = arith.constant 0 : index
    %45 = vector.load %arg8[%c0_22, %c0_23] : memref<1x256xf32, #tpu.memory_space<vmem>>, vector<1x256xf32>
    %46 = vector.broadcast %45 : vector<1x256xf32> to vector<128x256xf32>
    %47 = arith.addf %44, %46 : vector<128x256xf32>
    %cst_24 = arith.constant 0.000000e+00 : f32
    %48 = vector.broadcast %cst_24 : f32 to vector<128x256xf32>
    %49 = arith.maximumf %47, %48 : vector<128x256xf32>
    %50 = arith.truncf %49 : vector<128x256xf32> to vector<128x256xbf16>
    %c0_25 = arith.constant 0 : index
    %c0_26 = arith.constant 0 : index
    %51 = vector.load %arg9[%c0_25, %c0_26] : memref<256x128xbf16, #tpu.memory_space<vmem>>, vector<256x128xbf16>
    %cst_27 = arith.constant dense<0.000000e+00> : vector<128x128xf32>
    %52 = tpu.matmul %50, %51, %cst_27 {dimension_numbers = #tpu.dot_dimension_numbers<[1], [0], [0], [1], [0, 0, 1, 1], [], []>} : vector<128x256xbf16>, vector<256x128xbf16>, vector<128x128xf32> -> vector<128x128xf32>
    %c0_28 = arith.constant 0 : index
    %c0_29 = arith.constant 0 : index
    %53 = vector.load %arg10[%c0_28, %c0_29] : memref<1x128xf32, #tpu.memory_space<vmem>>, vector<1x128xf32>
    %54 = vector.broadcast %53 : vector<1x128xf32> to vector<128x128xf32>
    %55 = arith.addf %52, %54 : vector<128x128xf32>
    %56 = arith.addf %41, %55 : vector<128x128xf32>
    %c0_30 = arith.constant 0 : index
    %c0_31 = arith.constant 0 : index
    %57 = vector.load %arg11[%c0_30, %c0_31] : memref<1x128xf32, #tpu.memory_space<vmem>>, vector<1x128xf32>
    %c0_32 = arith.constant 0 : index
    %c0_33 = arith.constant 0 : index
    %58 = vector.load %arg12[%c0_32, %c0_33] : memref<1x128xf32, #tpu.memory_space<vmem>>, vector<1x128xf32>
    %cst_34 = arith.constant dense<0.000000e+00> : vector<128xf32>
    %59 = vector.multi_reduction <add>, %56, %cst_34 [1] : vector<128x128xf32> to vector<128xf32>
    %60 = vector.shape_cast %59 : vector<128xf32> to vector<128x1xf32>
    %cst_35 = arith.constant 1.280000e+02 : f32
    %61 = vector.broadcast %cst_35 : f32 to vector<128x1xf32>
    %62 = arith.divf %60, %61 : vector<128x1xf32>
    %63 = vector.broadcast %62 : vector<128x1xf32> to vector<128x128xf32>
    %64 = arith.subf %56, %63 : vector<128x128xf32>
    %65 = arith.mulf %64, %64 : vector<128x128xf32>
    %cst_36 = arith.constant dense<0.000000e+00> : vector<128xf32>
    %66 = vector.multi_reduction <add>, %65, %cst_36 [1] : vector<128x128xf32> to vector<128xf32>
    %67 = vector.shape_cast %66 : vector<128xf32> to vector<128x1xf32>
    %cst_37 = arith.constant 1.280000e+02 : f32
    %68 = vector.broadcast %cst_37 : f32 to vector<128x1xf32>
    %69 = arith.divf %67, %68 : vector<128x1xf32>
    %70 = vector.broadcast %62 : vector<128x1xf32> to vector<128x128xf32>
    %71 = arith.subf %56, %70 : vector<128x128xf32>
    %cst_38 = arith.constant 9.99999974E-6 : f32
    %72 = vector.broadcast %cst_38 : f32 to vector<128x1xf32>
    %73 = arith.addf %69, %72 : vector<128x1xf32>
    %74 = math.rsqrt %73 : vector<128x1xf32>
    %75 = vector.broadcast %74 : vector<128x1xf32> to vector<128x128xf32>
    %76 = arith.mulf %71, %75 : vector<128x128xf32>
    %77 = vector.broadcast %57 : vector<1x128xf32> to vector<128x128xf32>
    %78 = arith.mulf %76, %77 : vector<128x128xf32>
    %79 = vector.broadcast %58 : vector<1x128xf32> to vector<128x128xf32>
    %80 = arith.addf %78, %79 : vector<128x128xf32>
    %c0_39 = arith.constant 0 : index
    %c0_40 = arith.constant 0 : index
    %c0_41 = arith.constant 0 : index
    %81 = vector.load %arg13[%c0_39, %c0_40, %c0_41] : memref<1x128x128xf32, #tpu.memory_space<vmem>>, vector<1x128x128xf32>
    %82 = vector.shape_cast %81 : vector<1x128x128xf32> to vector<128x128xf32>
    %83 = vector.shape_cast %80 : vector<128x128xf32> to vector<1x128x128xf32>
    tpu.vector_store %arg13[%c0_39, %c0_40, %c0_41], %83 {strides = array<i32>} : memref<1x128x128xf32, #tpu.memory_space<vmem>>, vector<1x128x128xf32>,
    return
  }
  func.func @transform_0(%arg0: i32, %arg1: i32) -> (i32, i32, i32) {
    %c0_i32 = arith.constant 0 : i32
    %c0_i32_0 = arith.constant 0 : i32
    %c0_i32_1 = arith.constant 0 : i32
    return %arg0, %c0_i32, %c0_i32_0 : i32, i32, i32
  }
  func.func @transform_1(%arg0: i32, %arg1: i32) -> (i32, i32, i32) {
    %c0_i32 = arith.constant 0 : i32
    %c0_i32_0 = arith.constant 0 : i32
    %c0_i32_1 = arith.constant 0 : i32
    return %arg1, %c0_i32, %c0_i32_0 : i32, i32, i32
  }
  func.func @transform_2(%arg0: i32, %arg1: i32) -> (i32, i32) {
    %c0_i32 = arith.constant 0 : i32
    %c0_i32_0 = arith.constant 0 : i32
    %c0_i32_1 = arith.constant 0 : i32
    return %c0_i32, %c0_i32_0 : i32, i32
  }
  func.func @transform_3(%arg0: i32, %arg1: i32) -> (i32, i32) {
    %c0_i32 = arith.constant 0 : i32
    %c0_i32_0 = arith.constant 0 : i32
    %c0_i32_1 = arith.constant 0 : i32
    return %c0_i32, %c0_i32_0 : i32, i32
  }
  func.func @transform_4(%arg0: i32, %arg1: i32) -> (i32, i32) {
    %c0_i32 = arith.constant 0 : i32
    %c0_i32_0 = arith.constant 0 : i32
    %c0_i32_1 = arith.constant 0 : i32
    return %c0_i32, %c0_i32_0 : i32, i32
  }
  func.func @transform_5(%arg0: i32, %arg1: i32) -> (i32, i32) {
    %c0_i32 = arith.constant 0 : i32
    %c0_i32_0 = arith.constant 0 : i32
    %c0_i32_1 = arith.constant 0 : i32
    return %c0_i32, %c0_i32_0 : i32, i32
  }
  func.func @transform_6(%arg0: i32, %arg1: i32) -> (i32, i32) {
    %c0_i32 = arith.constant 0 : i32
    %c0_i32_0 = arith.constant 0 : i32
    %c0_i32_1 = arith.constant 0 : i32
    return %c0_i32, %c0_i32_0 : i32, i32
  }
  func.func @transform_7(%arg0: i32, %arg1: i32) -> (i32, i32) {
    %c0_i32 = arith.constant 0 : i32
    %c0_i32_0 = arith.constant 0 : i32
    %c0_i32_1 = arith.constant 0 : i32
    return %c0_i32, %c0_i32_0 : i32, i32
  }
  func.func @transform_8(%arg0: i32, %arg1: i32) -> (i32, i32) {
    %c0_i32 = arith.constant 0 : i32
    %c0_i32_0 = arith.constant 0 : i32
    %c0_i32_1 = arith.constant 0 : i32
    return %c0_i32, %c0_i32_0 : i32, i32
  }
  func.func @transform_9(%arg0: i32, %arg1: i32) -> (i32, i32) {
    %c0_i32 = arith.constant 0 : i32
    %c0_i32_0 = arith.constant 0 : i32
    %c0_i32_1 = arith.constant 0 : i32
    return %c0_i32, %c0_i32_0 : i32, i32
  }
  func.func @transform_10(%arg0: i32, %arg1: i32) -> (i32, i32) {
    %c0_i32 = arith.constant 0 : i32
    %c0_i32_0 = arith.constant 0 : i32
    %c0_i32_1 = arith.constant 0 : i32
    return %c0_i32, %c0_i32_0 : i32, i32
  }
  func.func @transform_11(%arg0: i32, %arg1: i32) -> (i32, i32, i32) {
    %c0_i32 = arith.constant 0 : i32
    %c0_i32_0 = arith.constant 0 : i32
    return %arg0, %arg1, %c0_i32 : i32, i32, i32
  }
}

</mosaic_0001>

<llo_original>
// kernel: fnet_block.1
$region0: #{fnet_block.1}
  #allocation0 [shape = 'u32[]', space=smem, size = 0x4, offset = 0x4, fixed_abs, tag = 'smem constant byte address 0x4 - core index']
  #allocation1 [shape = 'u32[144,128]{1,0:T(1,128)}', space=vmem, size = 0x12000, scoped, tag = 'internal scratch']
  %s0 = inlined_call_operand.vmem [shape: f32[2,256,128], index: 0, kind: input, shape index: {}]
  %s1 = inlined_call_operand.hbm [shape: bf16[2,256,256], index: 1, kind: input, shape index: {}]
  %s2 = inlined_call_operand.hbm [shape: bf16[256,128], index: 2, kind: input, shape index: {}]
  %s3 = inlined_call_operand.vmem [shape: f32[1,128], index: 3, kind: input, shape index: {}]
  %s4 = inlined_call_operand.vmem [shape: f32[1,128], index: 4, kind: input, shape index: {}]
  %s5 = inlined_call_operand.vmem [shape: bf16[128,256], index: 5, kind: input, shape index: {}]
  %s6 = inlined_call_operand.vmem [shape: f32[1,256], index: 6, kind: input, shape index: {}]
  %s7 = inlined_call_operand.vmem [shape: bf16[256,128], index: 7, kind: input, shape index: {}]
  %s8 = inlined_call_operand.vmem [shape: f32[1,128], index: 8, kind: input, shape index: {}]
  %s9 = inlined_call_operand.vmem [shape: f32[1,128], index: 9, kind: input, shape index: {}]
  %s10 = inlined_call_operand.vmem [shape: f32[1,128], index: 10, kind: input, shape index: {}]
  %s11 = inlined_call_operand.hbm [shape: f32[2,256,128], index: 11, kind: output, shape index: {}]
  %s12 = sld [smem:[#allocation0]]
  $region85: #{fnet_block.1} parent=0
    _
  %s14 = ssub.s32 1, %s12
  %s15 = scalar_select 0, %s14, %s12
  $region1: #{fnet_block.1} parent=0
    #allocation2 [shape = 'u8[262144]{0}', space=vmem, size = 0x40000, scoped, tag = 'input window, operand 1']
    #allocation3 [shape = 's32[2]{0}', space=sflag, size = 0x8, scoped, tag = 'scoped memory for fnet_block.1']
    #allocation4 [shape = 's32[2]{0}', space=sflag, size = 0x8, scoped, tag = 'scoped memory for fnet_block.1']
    #allocation5 [shape = 'u8[65536]{0}', space=vmem, size = 0x10000, scoped, tag = 'input window, operand 2, single buffered']
    #allocation6 [shape = 's32[1]{0}', space=sflag, size = 0x4, scoped, tag = 'scoped memory for fnet_block.1']
    #allocation7 [shape = 'u8[131072]{0}', space=vmem, size = 0x20000, scoped, tag = 'output window, operand 0']
    %16 = vsyncpa [#allocation3], 0
    %s17 = scalar_lea.sflag [#allocation3], 1
    %18 = vsyncpa %s17, 0
    %19 = vsyncpa [#allocation6], 0
    %20 = vsyncpa [#allocation4], 0
    %s21 = scalar_lea.sflag [#allocation4], 1
    %22 = vsyncpa %s21, 0
    loop: start=0, step=1, limit=6
    $region2: #{fnet_block.1} parent=1 // loop_pre_header
      _
    $region3: #{fnet_block.1} parent=1 // loop_header
      %s24 = sphi 0, %s28
      %p25 = scmp.ge.s32.totalorder %s24, 6
      %s31 = sphi 0, %s43
      %s32 = sphi 0, %s39
      %s33 = sphi 0, %s31
      %s34 = sphi 0, %s32
      %s35 = sphi 0, %s33
      %s36 = sphi 0, %s34
      %s46 = sphi 0, %s48
      %s49 = sphi 0, %s46
      %s50 = sphi 0, %s49
      %s66 = sphi 0, %s50
      %s72 = sphi 0, %s74
      %s75 = sphi 0, %s72
      %s76 = sphi 0, %s75
      %s92 = sphi 0, %s76
      %s96 = sphi 0, %s96
      %s98 = sphi 0, %s96
      %s99 = sphi 0, %s98
      %s113 = sphi 0, %s99
      %s117 = sphi 0, %s117
      %s119 = sphi 0, %s117
      %s120 = sphi 0, %s119
      %s134 = sphi 0, %s120
      %s138 = sphi 0, %s138
      %s140 = sphi 0, %s138
      %s141 = sphi 0, %s140
      %s155 = sphi 0, %s141
      %s159 = sphi 0, %s159
      %s161 = sphi 0, %s159
      %s162 = sphi 0, %s161
      %s176 = sphi 0, %s162
      %s180 = sphi 0, %s180
      %s182 = sphi 0, %s180
      %s183 = sphi 0, %s182
      %s197 = sphi 0, %s183
      %s201 = sphi 0, %s201
      %s203 = sphi 0, %s201
      %s204 = sphi 0, %s203
      %s218 = sphi 0, %s204
      %s222 = sphi 0, %s222
      %s224 = sphi 0, %s222
      %s225 = sphi 0, %s224
      %s239 = sphi 0, %s225
      %s243 = sphi 0, %s243
      %s245 = sphi 0, %s243
      %s246 = sphi 0, %s245
      %s260 = sphi 0, %s246
      %s264 = sphi 0, %s264
      %s266 = sphi 0, %s264
      %s267 = sphi 0, %s266
      %s281 = sphi 0, %s267
      %s289 = sphi 0, %s291
      %s292 = sphi 0, %s289
      %s293 = sphi 0, %s292
      %s309 = sphi 0, %s293
    $region4: #{fnet_block.1} parent=1 // loop_header_branch
      %27 = sbr.rel (%p25) target = $region8
    $region5: #{fnet_block.1} parent=1 // loop_body
      %s29 = ssub.s32 %s24, 1
      %s30 = ssub.s32 %s24, 2
      %s37 = sadd.s32 1, %s32
      %p38 = scmp.ge.s32.totalorder %s37, 2
      %s39 = scalar_select %p38, 0, %s37
      %s40 = sadd.s32 1, %s31
      %s41 = scalar_select %p38, %s40, %s31
      %p42 = scmp.ge.s32.totalorder %s41, 2
      %s43 = scalar_select %p42, 0, %s41
      %s44 = ssub.s32 %s31, %s43
      %p45 = scmp.eq.s32.totalorder %s44, 0
      %s47 = sadd.s32 %s46, 1
      %s48 = scalar_select %p45, %s46, %s47
      %p51 = pneg %p45
      %p52 = scmp.eq.s32.totalorder %s24, 3
      %p53 = por %p51, %p52
      %p54 = scmp.ne.s32.totalorder %s46, %s49
      %p55 = scmp.eq.s32.totalorder %s24, 0
      %p56 = por %p54, %p55
      %p57 = scmp.ne.s32.totalorder %s46, %s49
      %p58 = scmp.eq.s32.totalorder %s29, 3
      %p59 = por %p57, %p58
      %p60 = scmp.ne.s32.totalorder %s49, %s50
      %p61 = scmp.eq.s32.totalorder %s29, 0
      %p62 = por %p60, %p61
      %p63 = scmp.ne.s32.totalorder %s49, %s50
      %p64 = scmp.eq.s32.totalorder %s30, 3
      %p65 = por %p63, %p64
      %p67 = scmp.ne.s32.totalorder %s50, %s66
      %p68 = scmp.eq.s32.totalorder %s30, 0
      %p69 = por %p67, %p68
      %s70 = ssub.s32 %s32, %s39
      %p71 = scmp.eq.s32.totalorder %s70, 0
      %s73 = sadd.s32 %s72, 1
      %s74 = scalar_select %p71, %s72, %s73
      %p77 = pneg %p71
      %p78 = scmp.eq.s32.totalorder %s24, 3
      %p79 = por %p77, %p78
      %p80 = scmp.ne.s32.totalorder %s72, %s75
      %p81 = scmp.eq.s32.totalorder %s24, 0
      %p82 = por %p80, %p81
      %p83 = scmp.ne.s32.totalorder %s72, %s75
      %p84 = scmp.eq.s32.totalorder %s29, 3
      %p85 = por %p83, %p84
      %p86 = scmp.ne.s32.totalorder %s75, %s76
      %p87 = scmp.eq.s32.totalorder %s29, 0
      %p88 = por %p86, %p87
      %p89 = scmp.ne.s32.totalorder %s75, %s76
      %p90 = scmp.eq.s32.totalorder %s30, 3
      %p91 = por %p89, %p90
      %p93 = scmp.ne.s32.totalorder %s76, %s92
      %p94 = scmp.eq.s32.totalorder %s30, 0
      %p95 = por %p93, %p94
      %s97 = sadd.s32 %s96, 1
      %p100 = scmp.eq.s32.totalorder %s24, 3
      %p101 = scmp.ne.s32.totalorder %s96, %s98
      %p102 = scmp.eq.s32.totalorder %s24, 0
      %p103 = por %p101, %p102
      %p104 = scmp.ne.s32.totalorder %s96, %s98
      %p105 = scmp.eq.s32.totalorder %s29, 3
      %p106 = por %p104, %p105
      %p107 = scmp.ne.s32.totalorder %s98, %s99
      %p108 = scmp.eq.s32.totalorder %s29, 0
      %p109 = por %p107, %p108
      %p110 = scmp.ne.s32.totalorder %s98, %s99
      %p111 = scmp.eq.s32.totalorder %s30, 3
      %p112 = por %p110, %p111
      %p114 = scmp.ne.s32.totalorder %s99, %s113
      %p115 = scmp.eq.s32.totalorder %s30, 0
      %p116 = por %p114, %p115
      %s118 = sadd.s32 %s117, 1
      %p121 = scmp.eq.s32.totalorder %s24, 3
      %p122 = scmp.ne.s32.totalorder %s117, %s119
      %p123 = scmp.eq.s32.totalorder %s24, 0
      %p124 = por %p122, %p123
      %p125 = scmp.ne.s32.totalorder %s117, %s119
      %p126 = scmp.eq.s32.totalorder %s29, 3
      %p127 = por %p125, %p126
      %p128 = scmp.ne.s32.totalorder %s119, %s120
      %p129 = scmp.eq.s32.totalorder %s29, 0
      %p130 = por %p128, %p129
      %p131 = scmp.ne.s32.totalorder %s119, %s120
      %p132 = scmp.eq.s32.totalorder %s30, 3
      %p133 = por %p131, %p132
      %p135 = scmp.ne.s32.totalorder %s120, %s134
      %p136 = scmp.eq.s32.totalorder %s30, 0
      %p137 = por %p135, %p136
      %s139 = sadd.s32 %s138, 1
      %p142 = scmp.eq.s32.totalorder %s24, 3
      %p143 = scmp.ne.s32.totalorder %s138, %s140
      %p144 = scmp.eq.s32.totalorder %s24, 0
      %p145 = por %p143, %p144
      %p146 = scmp.ne.s32.totalorder %s138, %s140
      %p147 = scmp.eq.s32.totalorder %s29, 3
      %p148 = por %p146, %p147
      %p149 = scmp.ne.s32.totalorder %s140, %s141
      %p150 = scmp.eq.s32.totalorder %s29, 0
      %p151 = por %p149, %p150
      %p152 = scmp.ne.s32.totalorder %s140, %s141
      %p153 = scmp.eq.s32.totalorder %s30, 3
      %p154 = por %p152, %p153
      %p156 = scmp.ne.s32.totalorder %s141, %s155
      %p157 = scmp.eq.s32.totalorder %s30, 0
      %p158 = por %p156, %p157
      %s160 = sadd.s32 %s159, 1
      %p163 = scmp.eq.s32.totalorder %s24, 3
      %p164 = scmp.ne.s32.totalorder %s159, %s161
      %p165 = scmp.eq.s32.totalorder %s24, 0
      %p166 = por %p164, %p165
      %p167 = scmp.ne.s32.totalorder %s159, %s161
      %p168 = scmp.eq.s32.totalorder %s29, 3
      %p169 = por %p167, %p168
      %p170 = scmp.ne.s32.totalorder %s161, %s162
      %p171 = scmp.eq.s32.totalorder %s29, 0
      %p172 = por %p170, %p171
      %p173 = scmp.ne.s32.totalorder %s161, %s162
      %p174 = scmp.eq.s32.totalorder %s30, 3
      %p175 = por %p173, %p174
      %p177 = scmp.ne.s32.totalorder %s162, %s176
      %p178 = scmp.eq.s32.totalorder %s30, 0
      %p179 = por %p177, %p178
      %s181 = sadd.s32 %s180, 1
      %p184 = scmp.eq.s32.totalorder %s24, 3
      %p185 = scmp.ne.s32.totalorder %s180, %s182
      %p186 = scmp.eq.s32.totalorder %s24, 0
      %p187 = por %p185, %p186
      %p188 = scmp.ne.s32.totalorder %s180, %s182
      %p189 = scmp.eq.s32.totalorder %s29, 3
      %p190 = por %p188, %p189
      %p191 = scmp.ne.s32.totalorder %s182, %s183
      %p192 = scmp.eq.s32.totalorder %s29, 0
      %p193 = por %p191, %p192
      %p194 = scmp.ne.s32.totalorder %s182, %s183
      %p195 = scmp.eq.s32.totalorder %s30, 3
      %p196 = por %p194, %p195
      %p198 = scmp.ne.s32.totalorder %s183, %s197
      %p199 = scmp.eq.s32.totalorder %s30, 0
      %p200 = por %p198, %p199
      %s202 = sadd.s32 %s201, 1
      %p205 = scmp.eq.s32.totalorder %s24, 3
      %p206 = scmp.ne.s32.totalorder %s201, %s203
      %p207 = scmp.eq.s32.totalorder %s24, 0
      %p208 = por %p206, %p207
      %p209 = scmp.ne.s32.totalorder %s201, %s203
      %p210 = scmp.eq.s32.totalorder %s29, 3
      %p211 = por %p209, %p210
      %p212 = scmp.ne.s32.totalorder %s203, %s204
      %p213 = scmp.eq.s32.totalorder %s29, 0
      %p214 = por %p212, %p213
      %p215 = scmp.ne.s32.totalorder %s203, %s204
      %p216 = scmp.eq.s32.totalorder %s30, 3
      %p217 = por %p215, %p216
      %p219 = scmp.ne.s32.totalorder %s204, %s218
      %p220 = scmp.eq.s32.totalorder %s30, 0
      %p221 = por %p219, %p220
      %s223 = sadd.s32 %s222, 1
      %p226 = scmp.eq.s32.totalorder %s24, 3
      %p227 = scmp.ne.s32.totalorder %s222, %s224
      %p228 = scmp.eq.s32.totalorder %s24, 0
      %p229 = por %p227, %p228
      %p230 = scmp.ne.s32.totalorder %s222, %s224
      %p231 = scmp.eq.s32.totalorder %s29, 3
      %p232 = por %p230, %p231
      %p233 = scmp.ne.s32.totalorder %s224, %s225
      %p234 = scmp.eq.s32.totalorder %s29, 0
      %p235 = por %p233, %p234
      %p236 = scmp.ne.s32.totalorder %s224, %s225
      %p237 = scmp.eq.s32.totalorder %s30, 3
      %p238 = por %p236, %p237
      %p240 = scmp.ne.s32.totalorder %s225, %s239
      %p241 = scmp.eq.s32.totalorder %s30, 0
      %p242 = por %p240, %p241
      %s244 = sadd.s32 %s243, 1
      %p247 = scmp.eq.s32.totalorder %s24, 3
      %p248 = scmp.ne.s32.totalorder %s243, %s245
      %p249 = scmp.eq.s32.totalorder %s24, 0
      %p250 = por %p248, %p249
      %p251 = scmp.ne.s32.totalorder %s243, %s245
      %p252 = scmp.eq.s32.totalorder %s29, 3
      %p253 = por %p251, %p252
      %p254 = scmp.ne.s32.totalorder %s245, %s246
      %p255 = scmp.eq.s32.totalorder %s29, 0
      %p256 = por %p254, %p255
      %p257 = scmp.ne.s32.totalorder %s245, %s246
      %p258 = scmp.eq.s32.totalorder %s30, 3
      %p259 = por %p257, %p258
      %p261 = scmp.ne.s32.totalorder %s246, %s260
      %p262 = scmp.eq.s32.totalorder %s30, 0
      %p263 = por %p261, %p262
      %s265 = sadd.s32 %s264, 1
      %p268 = scmp.eq.s32.totalorder %s24, 3
      %p269 = scmp.ne.s32.totalorder %s264, %s266
      %p270 = scmp.eq.s32.totalorder %s24, 0
      %p271 = por %p269, %p270
      %p272 = scmp.ne.s32.totalorder %s264, %s266
      %p273 = scmp.eq.s32.totalorder %s29, 3
      %p274 = por %p272, %p273
      %p275 = scmp.ne.s32.totalorder %s266, %s267
      %p276 = scmp.eq.s32.totalorder %s29, 0
      %p277 = por %p275, %p276
      %p278 = scmp.ne.s32.totalorder %s266, %s267
      %p279 = scmp.eq.s32.totalorder %s30, 3
      %p280 = por %p278, %p279
      %p282 = scmp.ne.s32.totalorder %s267, %s281
      %p283 = scmp.eq.s32.totalorder %s30, 0
      %p284 = por %p282, %p283
      %s285 = ssub.s32 %s31, %s43
      %s286 = ssub.s32 %s32, %s39
      %s287 = sor.u32 %s285, %s286
      %p288 = scmp.eq.s32.totalorder %s287, 0
      %s290 = sadd.s32 %s289, 1
      %s291 = scalar_select %p288, %s289, %s290
      %p294 = pneg %p288
      %p295 = scmp.eq.s32.totalorder %s24, 3
      %p296 = por %p294, %p295
      %p297 = scmp.ne.s32.totalorder %s289, %s292
      %p298 = scmp.eq.s32.totalorder %s24, 0
      %p299 = por %p297, %p298
      %p300 = scmp.ne.s32.totalorder %s289, %s292
      %p301 = scmp.eq.s32.totalorder %s29, 3
      %p302 = por %p300, %p301
      %p303 = scmp.ne.s32.totalorder %s292, %s293
      %p304 = scmp.eq.s32.totalorder %s29, 0
      %p305 = por %p303, %p304
      %p306 = scmp.ne.s32.totalorder %s292, %s293
      %p307 = scmp.eq.s32.totalorder %s30, 3
      %p308 = por %p306, %p307
      %p310 = scmp.ne.s32.totalorder %s293, %s309
      %p311 = scmp.eq.s32.totalorder %s30, 0
      %p312 = por %p310, %p311
      %p313 = scmp.le.s32.totalorder 1, %s24
      %p314 = scmp.lt.s32.totalorder %s24, 5
      %p315 = pnand %p313, %p314
      %p316 = pneg %p315
      // Predicated region
      $region9: #{fnet_block.1} parent=5 // pred_check
        _
      $region10: #{fnet_block.1} parent=5 // pred_check_branch
        %318 = sbr.rel (%p315) target = $region12
      $region11: #{fnet_block.1} parent=5 // pred_region
        %s319 = ssub.s32 %s24, 1
        // Predicated region
        $region13: #{fnet_block.1} parent=11 // pred_check
          %p320 = pneg %p109
        $region14: #{fnet_block.1} parent=11 // pred_check_branch
          %322 = sbr.rel (%p320) target = $region16
        $region15: #{fnet_block.1} parent=11 // pred_region
          %s324 = ssub.s32 2048, 2048
          %325 = vsyncadd [#allocation6], %s324
          %s326 = sshll.u32 [#allocation5], 4
          %s327 = int_to_ptr.vmem [resolvable:$true] %s326
          %332 = dma.hbm_to_vmem [thread:$0]  %s2, 2048, %s327, [#allocation6], 64, 64, 4
        $region16: #{fnet_block.1} parent=11 // pred_fallthru
          _
        // Predicated region
        $region17: #{fnet_block.1} parent=11 // pred_check
          %p333 = pneg %p130
        $region18: #{fnet_block.1} parent=11 // pred_check_branch
          %335 = sbr.rel (%p333) target = $region20
        $region19: #{fnet_block.1} parent=11 // pred_region
          _
        $region20: #{fnet_block.1} parent=11 // pred_fallthru
          _
        // Predicated region
        $region21: #{fnet_block.1} parent=11 // pred_check
          %p336 = pneg %p151
        $region22: #{fnet_block.1} parent=11 // pred_check_branch
          %338 = sbr.rel (%p336) target = $region24
        $region23: #{fnet_block.1} parent=11 // pred_region
          _
        $region24: #{fnet_block.1} parent=11 // pred_fallthru
          _
        // Predicated region
        $region25: #{fnet_block.1} parent=11 // pred_check
          %p339 = pneg %p172
        $region26: #{fnet_block.1} parent=11 // pred_check_branch
          %341 = sbr.rel (%p339) target = $region28
        $region27: #{fnet_block.1} parent=11 // pred_region
          _
        $region28: #{fnet_block.1} parent=11 // pred_fallthru
          _
        // Predicated region
        $region29: #{fnet_block.1} parent=11 // pred_check
          %p342 = pneg %p193
        $region30: #{fnet_block.1} parent=11 // pred_check_branch
          %344 = sbr.rel (%p342) target = $region32
        $region31: #{fnet_block.1} parent=11 // pred_region
          _
        $region32: #{fnet_block.1} parent=11 // pred_fallthru
          _
        // Predicated region
        $region33: #{fnet_block.1} parent=11 // pred_check
          %p345 = pneg %p214
        $region34: #{fnet_block.1} parent=11 // pred_check_branch
          %347 = sbr.rel (%p345) target = $region36
        $region35: #{fnet_block.1} parent=11 // pred_region
          _
        $region36: #{fnet_block.1} parent=11 // pred_fallthru
          _
        // Predicated region
        $region37: #{fnet_block.1} parent=11 // pred_check
          %p348 = pneg %p235
        $region38: #{fnet_block.1} parent=11 // pred_check_branch
          %350 = sbr.rel (%p348) target = $region40
        $region39: #{fnet_block.1} parent=11 // pred_region
          _
        $region40: #{fnet_block.1} parent=11 // pred_fallthru
          _
        // Predicated region
        $region41: #{fnet_block.1} parent=11 // pred_check
          %p351 = pneg %p256
        $region42: #{fnet_block.1} parent=11 // pred_check_branch
          %353 = sbr.rel (%p351) target = $region44
        $region43: #{fnet_block.1} parent=11 // pred_region
          _
        $region44: #{fnet_block.1} parent=11 // pred_fallthru
          _
        // Predicated region
        $region45: #{fnet_block.1} parent=11 // pred_check
          %p354 = pneg %p277
        $region46: #{fnet_block.1} parent=11 // pred_check_branch
          %356 = sbr.rel (%p354) target = $region48
        $region47: #{fnet_block.1} parent=11 // pred_region
          _
        $region48: #{fnet_block.1} parent=11 // pred_fallthru
          _
      $region12: #{fnet_block.1} parent=5 // pred_fallthru
        _
      %p357 = scmp.lt.s32.totalorder %s24, 4
      // Predicated region
      $region49: #{fnet_block.1} parent=5 // pred_check
        %p358 = pneg %p357
      $region50: #{fnet_block.1} parent=5 // pred_check_branch
        %360 = sbr.rel (%p358) target = $region52
      $region51: #{fnet_block.1} parent=5 // pred_region
        // Predicated region
        $region53: #{fnet_block.1} parent=51 // pred_check
          %p361 = pneg %p56
        $region54: #{fnet_block.1} parent=51 // pred_check_branch
          %363 = sbr.rel (%p361) target = $region56
        $region55: #{fnet_block.1} parent=51 // pred_region
          %p364 = scmp.lt.s32.totalorder %s31, 1
          %s365 = scalar_select %p364, %s31, 1
          %s366 = smul.addr %s365, 32
          %s367 = smul.addr %s366, 8
          %s368 = scalar_lea.vmem %s0, %s367
        $region56: #{fnet_block.1} parent=51 // pred_fallthru
          _
        // Predicated region
        $region57: #{fnet_block.1} parent=51 // pred_check
          %p369 = pneg %p82
        $region58: #{fnet_block.1} parent=51 // pred_check_branch
          %371 = sbr.rel (%p369) target = $region60
        $region59: #{fnet_block.1} parent=51 // pred_region
          %s372 = sand.u32 %s72, 1
          %s373 = scalar_lea.sflag [#allocation3], %s372
          %s374 = sand.u32 %s72, 1
          %s375 = smul.addr %s374, 256
          %s376 = scalar_lea.vmem [#allocation2], %s375
          %s378 = ssub.s32 4096, 4096
          %379 = vsyncadd %s373, %s378
          %s380 = smul.addr %s32, 64
          %s381 = smul.addr %s380, 64
          %s382 = scalar_lea.hbm %s1, %s381
          %s383 = sshll.u32 %s376, 4
          %s384 = int_to_ptr.vmem [resolvable:$true] %s383
          %389 = dma.hbm_to_vmem [thread:$0]  %s382, 4096, %s384, %s373, 128, 128, 8
        $region60: #{fnet_block.1} parent=51 // pred_fallthru
          _
      $region52: #{fnet_block.1} parent=5 // pred_fallthru
        _
      %p390 = scmp.le.s32.totalorder 1, %s24
      %p391 = scmp.lt.s32.totalorder %s24, 5
      %p392 = pnand %p390, %p391
      %p393 = pneg %p392
      // Predicated region
      $region61: #{fnet_block.1} parent=5 // pred_check
        _
      $region62: #{fnet_block.1} parent=5 // pred_check_branch
        %395 = sbr.rel (%p392) target = $region64
      $region63: #{fnet_block.1} parent=5 // pred_region
        %s396 = ssub.s32 %s24, 1
        %s397 = sand.u32 %s75, 1
        %s398 = scalar_lea.sflag [#allocation3], %s397
        %s399 = sand.u32 %s75, 1
        %s400 = smul.addr %s399, 256
        %s401 = scalar_lea.vmem [#allocation2], %s400
        // Predicated region
        $region65: #{fnet_block.1} parent=63 // pred_check
          %p402 = pneg %p88
        $region66: #{fnet_block.1} parent=63 // pred_check_branch
          %404 = sbr.rel (%p402) target = $region68
        $region67: #{fnet_block.1} parent=63 // pred_region
          %405 = dma.done %s398, 4096
        $region68: #{fnet_block.1} parent=63 // pred_fallthru
          _
        // Predicated region
        $region69: #{fnet_block.1} parent=63 // pred_check
          %p406 = pneg %p109
        $region70: #{fnet_block.1} parent=63 // pred_check_branch
          %408 = sbr.rel (%p406) target = $region72
        $region71: #{fnet_block.1} parent=63 // pred_region
          %409 = dma.done [#allocation6], 2048
        $region72: #{fnet_block.1} parent=63 // pred_fallthru
          _
        %p410 = scmp.lt.s32.totalorder %s33, 1
        %s411 = scalar_select %p410, %s33, 1
        %s412 = smul.addr %s411, 32
        %s413 = smul.addr %s412, 8
        %s414 = scalar_lea.vmem %s0, %s413
        %p415 = pneg %p62
        %p416 = pneg %p59
        %s417 = sand.u32 %s75, 1
        %s418 = scalar_lea.sflag [#allocation3], %s417
        %s419 = sand.u32 %s75, 1
        %s420 = smul.addr %s419, 256
        %s421 = scalar_lea.vmem [#allocation2], %s420
        %p422 = pneg %p88
        %p423 = pneg %p85
        %p424 = pneg %p109
        %p425 = pneg %p106
        %p426 = pneg %p130
        %p427 = pneg %p127
        %p428 = pneg %p151
        %p429 = pneg %p148
        %p430 = pneg %p172
        %p431 = pneg %p169
        %p432 = pneg %p193
        %p433 = pneg %p190
        %p434 = pneg %p214
        %p435 = pneg %p211
        %p436 = pneg %p235
        %p437 = pneg %p232
        %p438 = pneg %p256
        %p439 = pneg %p253
        %p440 = pneg %p277
        %p441 = pneg %p274
        %p442 = pneg %p305
        %p443 = pneg %p302
        %s444 = sand.u32 %s292, 1
        %s445 = scalar_lea.sflag [#allocation4], %s444
        %s446 = sand.u32 %s292, 1
        %s447 = smul.addr %s446, 128
        %s448 = scalar_lea.vmem [#allocation7], %s447
        %p449 = scmp.lt.s32.totalorder %s33, 1
        %s450 = scalar_select %p449, %s33, 1
        %s451 = smul.addr %s450, 32
        %s452 = smul.addr %s451, 8
        %s453 = scalar_lea.vmem %s0, %s452
        %s454 = smul.u32 16, %s34
        %v456 = vld [vmem:[%s453] sm:$0xff]
        %v457 = vld [vmem:[%s453 + $0x8] sm:$0xff]
        %v458 = vld [vmem:[%s453 + $0x10] sm:$0xff]
        %v459 = vld [vmem:[%s453 + $0x18] sm:$0xff]
        %v460 = vld [vmem:[%s453 + $0x20] sm:$0xff]
        %v461 = vld [vmem:[%s453 + $0x28] sm:$0xff]
        %v462 = vld [vmem:[%s453 + $0x30] sm:$0xff]
        %v463 = vld [vmem:[%s453 + $0x38] sm:$0xff]
        %v464 = vld [vmem:[%s453 + $0x40] sm:$0xff]
        %v465 = vld [vmem:[%s453 + $0x48] sm:$0xff]
        %v466 = vld [vmem:[%s453 + $0x50] sm:$0xff]
        %v467 = vld [vmem:[%s453 + $0x58] sm:$0xff]
        %v468 = vld [vmem:[%s453 + $0x60] sm:$0xff]
        %v469 = vld [vmem:[%s453 + $0x68] sm:$0xff]
        %v470 = vld [vmem:[%s453 + $0x70] sm:$0xff]
        %v471 = vld [vmem:[%s453 + $0x78] sm:$0xff]
        %v472 = vld [vmem:[%s453 + $0x80] sm:$0xff]
        %v473 = vld [vmem:[%s453 + $0x88] sm:$0xff]
        %v474 = vld [vmem:[%s453 + $0x90] sm:$0xff]
        %v475 = vld [vmem:[%s453 + $0x98] sm:$0xff]
        %v476 = vld [vmem:[%s453 + $0xa0] sm:$0xff]
        %v477 = vld [vmem:[%s453 + $0xa8] sm:$0xff]
        %v478 = vld [vmem:[%s453 + $0xb0] sm:$0xff]
        %v479 = vld [vmem:[%s453 + $0xb8] sm:$0xff]
        %v480 = vld [vmem:[%s453 + $0xc0] sm:$0xff]
        %v481 = vld [vmem:[%s453 + $0xc8] sm:$0xff]
        %v482 = vld [vmem:[%s453 + $0xd0] sm:$0xff]
        %v483 = vld [vmem:[%s453 + $0xd8] sm:$0xff]
        %v484 = vld [vmem:[%s453 + $0xe0] sm:$0xff]
        %v485 = vld [vmem:[%s453 + $0xe8] sm:$0xff]
        %v486 = vld [vmem:[%s453 + $0xf0] sm:$0xff]
        %v487 = vld [vmem:[%s453 + $0xf8] sm:$0xff]
        %v488 = vpack.c.bf16 %v457, %v456
        %v489 = vpack.c.bf16 %v459, %v458
        %v490 = vpack.c.bf16 %v461, %v460
        %v491 = vpack.c.bf16 %v463, %v462
        %v492 = vpack.c.bf16 %v465, %v464
        %v493 = vpack.c.bf16 %v467, %v466
        %v494 = vpack.c.bf16 %v469, %v468
        %v495 = vpack.c.bf16 %v471, %v470
        %v496 = vpack.c.bf16 %v473, %v472
        %v497 = vpack.c.bf16 %v475, %v474
        %v498 = vpack.c.bf16 %v477, %v476
        %v499 = vpack.c.bf16 %v479, %v478
        %v500 = vpack.c.bf16 %v481, %v480
        %v501 = vpack.c.bf16 %v483, %v482
        %v502 = vpack.c.bf16 %v485, %v484
        %v503 = vpack.c.bf16 %v487, %v486
        %v504 = vld [vmem:[%s401] sm:$0xff]
        %v505 = vld [vmem:[%s401 + $0x8] sm:$0xff]
        %v506 = vld [vmem:[%s401 + $0x10] sm:$0xff]
        %v507 = vld [vmem:[%s401 + $0x18] sm:$0xff]
        %v508 = vld [vmem:[%s401 + $0x20] sm:$0xff]
        %v509 = vld [vmem:[%s401 + $0x28] sm:$0xff]
        %v510 = vld [vmem:[%s401 + $0x30] sm:$0xff]
        %v511 = vld [vmem:[%s401 + $0x38] sm:$0xff]
        %v512 = vld [vmem:[%s401 + $0x40] sm:$0xff]
        %v513 = vld [vmem:[%s401 + $0x48] sm:$0xff]
        %v514 = vld [vmem:[%s401 + $0x50] sm:$0xff]
        %v515 = vld [vmem:[%s401 + $0x58] sm:$0xff]
        %v516 = vld [vmem:[%s401 + $0x60] sm:$0xff]
        %v517 = vld [vmem:[%s401 + $0x68] sm:$0xff]
        %v518 = vld [vmem:[%s401 + $0x70] sm:$0xff]
        %v519 = vld [vmem:[%s401 + $0x78] sm:$0xff]
        %v520 = vld [vmem:[%s401 + $0x80] sm:$0xff]
        %v521 = vld [vmem:[%s401 + $0x88] sm:$0xff]
        %v522 = vld [vmem:[%s401 + $0x90] sm:$0xff]
        %v523 = vld [vmem:[%s401 + $0x98] sm:$0xff]
        %v524 = vld [vmem:[%s401 + $0xa0] sm:$0xff]
        %v525 = vld [vmem:[%s401 + $0xa8] sm:$0xff]
        %v526 = vld [vmem:[%s401 + $0xb0] sm:$0xff]
        %v527 = vld [vmem:[%s401 + $0xb8] sm:$0xff]
        %v528 = vld [vmem:[%s401 + $0xc0] sm:$0xff]
        %v529 = vld [vmem:[%s401 + $0xc8] sm:$0xff]
        %v530 = vld [vmem:[%s401 + $0xd0] sm:$0xff]
        %v531 = vld [vmem:[%s401 + $0xd8] sm:$0xff]
        %v532 = vld [vmem:[%s401 + $0xe0] sm:$0xff]
        %v533 = vld [vmem:[%s401 + $0xe8] sm:$0xff]
        %v534 = vld [vmem:[%s401 + $0xf0] sm:$0xff]
        %v535 = vld [vmem:[%s401 + $0xf8] sm:$0xff]
        %v568 = vunpack.c.l.b16 %v504
        %v569 = vunpack.c.h.b16 %v504
        %v570 = vunpack.c.l.b16 %v505
        %v571 = vunpack.c.h.b16 %v505
        %v572 = vunpack.c.l.b16 %v506
        %v573 = vunpack.c.h.b16 %v506
        %v574 = vunpack.c.l.b16 %v507
        %v575 = vunpack.c.h.b16 %v507
        %v576 = vunpack.c.l.b16 %v508
        %v577 = vunpack.c.h.b16 %v508
        %v578 = vunpack.c.l.b16 %v509
        %v579 = vunpack.c.h.b16 %v509
        %v580 = vunpack.c.l.b16 %v510
        %v581 = vunpack.c.h.b16 %v510
        %v582 = vunpack.c.l.b16 %v511
        %v583 = vunpack.c.h.b16 %v511
        %v584 = vunpack.c.l.b16 %v512
        %v585 = vunpack.c.h.b16 %v512
        %v586 = vunpack.c.l.b16 %v513
        %v587 = vunpack.c.h.b16 %v513
        %v588 = vunpack.c.l.b16 %v514
        %v589 = vunpack.c.h.b16 %v514
        %v590 = vunpack.c.l.b16 %v515
        %v591 = vunpack.c.h.b16 %v515
        %v592 = vunpack.c.l.b16 %v516
        %v593 = vunpack.c.h.b16 %v516
        %v594 = vunpack.c.l.b16 %v517
        %v595 = vunpack.c.h.b16 %v517
        %v596 = vunpack.c.l.b16 %v518
        %v597 = vunpack.c.h.b16 %v518
        %v598 = vunpack.c.l.b16 %v519
        %v599 = vunpack.c.h.b16 %v519
        %v600 = vunpack.c.l.b16 %v520
        %v601 = vunpack.c.h.b16 %v520
        %v602 = vunpack.c.l.b16 %v521
        %v603 = vunpack.c.h.b16 %v521
        %v604 = vunpack.c.l.b16 %v522
        %v605 = vunpack.c.h.b16 %v522
        %v606 = vunpack.c.l.b16 %v523
        %v607 = vunpack.c.h.b16 %v523
        %v608 = vunpack.c.l.b16 %v524
        %v609 = vunpack.c.h.b16 %v524
        %v610 = vunpack.c.l.b16 %v525
        %v611 = vunpack.c.h.b16 %v525
        %v612 = vunpack.c.l.b16 %v526
        %v613 = vunpack.c.h.b16 %v526
        %v614 = vunpack.c.l.b16 %v527
        %v615 = vunpack.c.h.b16 %v527
        %v616 = vunpack.c.l.b16 %v528
        %v617 = vunpack.c.h.b16 %v528
        %v618 = vunpack.c.l.b16 %v529
        %v619 = vunpack.c.h.b16 %v529
        %v620 = vunpack.c.l.b16 %v530
        %v621 = vunpack.c.h.b16 %v530
        %v622 = vunpack.c.l.b16 %v531
        %v623 = vunpack.c.h.b16 %v531
        %v624 = vunpack.c.l.b16 %v532
        %v625 = vunpack.c.h.b16 %v532
        %v626 = vunpack.c.l.b16 %v533
        %v627 = vunpack.c.h.b16 %v533
        %v628 = vunpack.c.l.b16 %v534
        %v629 = vunpack.c.h.b16 %v534
        %v630 = vunpack.c.l.b16 %v535
        %v631 = vunpack.c.h.b16 %v535
        %v632 = vpack.c.b16 %v570, %v568
        %v633 = vpack.c.b16 %v571, %v569
        %v634 = vpack.c.b16 %v574, %v572
        %v635 = vpack.c.b16 %v575, %v573
        %v636 = vpack.c.b16 %v578, %v576
        %v637 = vpack.c.b16 %v579, %v577
        %v638 = vpack.c.b16 %v582, %v580
        %v639 = vpack.c.b16 %v583, %v581
        %v640 = vpack.c.b16 %v586, %v584
        %v641 = vpack.c.b16 %v587, %v585
        %v642 = vpack.c.b16 %v590, %v588
        %v643 = vpack.c.b16 %v591, %v589
        %v644 = vpack.c.b16 %v594, %v592
        %v645 = vpack.c.b16 %v595, %v593
        %v646 = vpack.c.b16 %v598, %v596
        %v647 = vpack.c.b16 %v599, %v597
        %v648 = vpack.c.b16 %v602, %v600
        %v649 = vpack.c.b16 %v603, %v601
        %v650 = vpack.c.b16 %v606, %v604
        %v651 = vpack.c.b16 %v607, %v605
        %v652 = vpack.c.b16 %v610, %v608
        %v653 = vpack.c.b16 %v611, %v609
        %v654 = vpack.c.b16 %v614, %v612
        %v655 = vpack.c.b16 %v615, %v613
        %v656 = vpack.c.b16 %v618, %v616
        %v657 = vpack.c.b16 %v619, %v617
        %v658 = vpack.c.b16 %v622, %v620
        %v659 = vpack.c.b16 %v623, %v621
        %v660 = vpack.c.b16 %v626, %v624
        %v661 = vpack.c.b16 %v627, %v625
        %v662 = vpack.c.b16 %v630, %v628
        %v663 = vpack.c.b16 %v631, %v629
        %696 = vmatprep.subr.bf16.mxu0 0
        %697 = vmatpush1.bf16.msra.mxu0 %v488
        %698 = vmatprep.subr.bf16.mxu0 0
        %699 = vmatpush1.bf16.msra.mxu0 %v489
        %700 = vmatprep.subr.bf16.mxu0 0
        %701 = vmatpush1.bf16.msra.mxu0 %v490
        %702 = vmatprep.subr.bf16.mxu0 0
        %703 = vmatpush1.bf16.msra.mxu0 %v491
        %704 = vmatprep.subr.bf16.mxu0 0
        %705 = vmatpush1.bf16.msra.mxu0 %v492
        %706 = vmatprep.subr.bf16.mxu0 0
        %707 = vmatpush1.bf16.msra.mxu0 %v493
        %708 = vmatprep.subr.bf16.mxu0 0
        %709 = vmatpush1.bf16.msra.mxu0 %v494
        %710 = vmatprep.subr.bf16.mxu0 0
        %711 = vmatpush1.bf16.msra.mxu0 %v495
        %712 = vmatprep.subr.bf16.mxu0 0
        %713 = vmatpush1.bf16.msra.mxu0 %v496
        %714 = vmatprep.subr.bf16.mxu0 0
        %715 = vmatpush1.bf16.msra.mxu0 %v497
        %716 = vmatprep.subr.bf16.mxu0 0
        %717 = vmatpush1.bf16.msra.mxu0 %v498
        %718 = vmatprep.subr.bf16.mxu0 0
        %719 = vmatpush1.bf16.msra.mxu0 %v499
        %720 = vmatprep.subr.bf16.mxu0 0
        %721 = vmatpush1.bf16.msra.mxu0 %v500
        %722 = vmatprep.subr.bf16.mxu0 0
        %723 = vmatpush1.bf16.msra.mxu0 %v501
        %724 = vmatprep.subr.bf16.mxu0 0
        %725 = vmatpush1.bf16.msra.mxu0 %v502
        %726 = vmatprep.subr.bf16.mxu0 0
        %727 = vmatpush1.bf16.msra.mxu0 %v503
        %728 = vmatprep.mubr.bf16.mxu0 %v633
        %729 = vmatmul.mubr.bf16.gmra.mrb[0].mxu0 %v632
        %v730 = vpop.f32.mrb[0].mxu0
        %v731 = vadd.f32 0.0, %v730
        %v732 = vpop.f32.mrb[0].mxu0
        %v733 = vpop.f32.mrb[0].mxu0
        %v734 = vadd.f32 0.0, %v733
        %v735 = vpop.f32.mrb[0].mxu0
        %736 = vmatprep.mubr.bf16.mxu0 %v635
        %737 = vmatmul.mubr.bf16.gmra.mrb[0].mxu0 %v634
        %v738 = vpop.f32.mrb[0].mxu0
        %v739 = vadd.f32 0.0, %v738
        %v740 = vpop.f32.mrb[0].mxu0
        %v741 = vpop.f32.mrb[0].mxu0
        %v742 = vadd.f32 0.0, %v741
        %v743 = vpop.f32.mrb[0].mxu0
        %744 = vmatprep.mubr.bf16.mxu0 %v637
        %745 = vmatmul.mubr.bf16.gmra.mrb[0].mxu0 %v636
        %v746 = vpop.f32.mrb[0].mxu0
        %v747 = vadd.f32 0.0, %v746
        %v748 = vpop.f32.mrb[0].mxu0
        %v749 = vpop.f32.mrb[0].mxu0
        %v750 = vadd.f32 0.0, %v749
        %v751 = vpop.f32.mrb[0].mxu0
        %752 = vmatprep.mubr.bf16.mxu0 %v639
        %753 = vmatmul.mubr.bf16.gmra.mrb[0].mxu0 %v638
        %v754 = vpop.f32.mrb[0].mxu0
        %v755 = vadd.f32 0.0, %v754
        %v756 = vpop.f32.mrb[0].mxu0
        %v757 = vpop.f32.mrb[0].mxu0
        %v758 = vadd.f32 0.0, %v757
        %v759 = vpop.f32.mrb[0].mxu0
        %760 = vmatprep.mubr.bf16.mxu0 %v641
        %761 = vmatmul.mubr.bf16.gmra.mrb[0].mxu0 %v640
        %v762 = vpop.f32.mrb[0].mxu0
        %v763 = vadd.f32 0.0, %v762
        %v764 = vpop.f32.mrb[0].mxu0
        %v765 = vpop.f32.mrb[0].mxu0
        %v766 = vadd.f32 0.0, %v765
        %v767 = vpop.f32.mrb[0].mxu0
        %768 = vmatprep.mubr.bf16.mxu0 %v643
        %769 = vmatmul.mubr.bf16.gmra.mrb[0].mxu0 %v642
        %v770 = vpop.f32.mrb[0].mxu0
        %v771 = vadd.f32 0.0, %v770
        %v772 = vpop.f32.mrb[0].mxu0
        %v773 = vpop.f32.mrb[0].mxu0
        %v774 = vadd.f32 0.0, %v773
        %v775 = vpop.f32.mrb[0].mxu0
        %776 = vmatprep.mubr.bf16.mxu0 %v645
        %777 = vmatmul.mubr.bf16.gmra.mrb[0].mxu0 %v644
        %v778 = vpop.f32.mrb[0].mxu0
        %v779 = vadd.f32 0.0, %v778
        %v780 = vpop.f32.mrb[0].mxu0
        %v781 = vpop.f32.mrb[0].mxu0
        %v782 = vadd.f32 0.0, %v781
        %v783 = vpop.f32.mrb[0].mxu0
        %784 = vmatprep.mubr.bf16.mxu0 %v647
        %785 = vmatmul.mubr.bf16.gmra.mrb[0].mxu0 %v646
        %v786 = vpop.f32.mrb[0].mxu0
        %v787 = vadd.f32 0.0, %v786
        %v788 = vpop.f32.mrb[0].mxu0
        %v789 = vpop.f32.mrb[0].mxu0
        %v790 = vadd.f32 0.0, %v789
        %v791 = vpop.f32.mrb[0].mxu0
        %792 = vmatprep.mubr.bf16.mxu0 %v649
        %793 = vmatmul.mubr.bf16.gmra.mrb[0].mxu0 %v648
        %v794 = vpop.f32.mrb[0].mxu0
        %v795 = vadd.f32 0.0, %v794
        %v796 = vpop.f32.mrb[0].mxu0
        %v797 = vpop.f32.mrb[0].mxu0
        %v798 = vadd.f32 0.0, %v797
        %v799 = vpop.f32.mrb[0].mxu0
        %800 = vmatprep.mubr.bf16.mxu0 %v651
        %801 = vmatmul.mubr.bf16.gmra.mrb[0].mxu0 %v650
        %v802 = vpop.f32.mrb[0].mxu0
        %v803 = vadd.f32 0.0, %v802
        %v804 = vpop.f32.mrb[0].mxu0
        %v805 = vpop.f32.mrb[0].mxu0
        %v806 = vadd.f32 0.0, %v805
        %v807 = vpop.f32.mrb[0].mxu0
        %808 = vmatprep.mubr.bf16.mxu0 %v653
        %809 = vmatmul.mubr.bf16.gmra.mrb[0].mxu0 %v652
        %v810 = vpop.f32.mrb[0].mxu0
        %v811 = vadd.f32 0.0, %v810
        %v812 = vpop.f32.mrb[0].mxu0
        %v813 = vpop.f32.mrb[0].mxu0
        %v814 = vadd.f32 0.0, %v813
        %v815 = vpop.f32.mrb[0].mxu0
        %816 = vmatprep.mubr.bf16.mxu0 %v655
        %817 = vmatmul.mubr.bf16.gmra.mrb[0].mxu0 %v654
        %v818 = vpop.f32.mrb[0].mxu0
        %v819 = vadd.f32 0.0, %v818
        %v820 = vpop.f32.mrb[0].mxu0
        %v821 = vpop.f32.mrb[0].mxu0
        %v822 = vadd.f32 0.0, %v821
        %v823 = vpop.f32.mrb[0].mxu0
        %824 = vmatprep.mubr.bf16.mxu0 %v657
        %825 = vmatmul.mubr.bf16.gmra.mrb[0].mxu0 %v656
        %v826 = vpop.f32.mrb[0].mxu0
        %v827 = vadd.f32 0.0, %v826
        %v828 = vpop.f32.mrb[0].mxu0
        %v829 = vpop.f32.mrb[0].mxu0
        %v830 = vadd.f32 0.0, %v829
        %v831 = vpop.f32.mrb[0].mxu0
        %832 = vmatprep.mubr.bf16.mxu0 %v659
        %833 = vmatmul.mubr.bf16.gmra.mrb[0].mxu0 %v658
        %v834 = vpop.f32.mrb[0].mxu0
        %v835 = vadd.f32 0.0, %v834
        %v836 = vpop.f32.mrb[0].mxu0
        %v837 = vpop.f32.mrb[0].mxu0
        %v838 = vadd.f32 0.0, %v837
        %v839 = vpop.f32.mrb[0].mxu0
        %840 = vmatprep.mubr.bf16.mxu0 %v661
        %841 = vmatmul.mubr.bf16.gmra.mrb[0].mxu0 %v660
        %v842 = vpop.f32.mrb[0].mxu0
        %v843 = vadd.f32 0.0, %v842
        %v844 = vpop.f32.mrb[0].mxu0
        %v845 = vpop.f32.mrb[0].mxu0
        %v846 = vadd.f32 0.0, %v845
        %v847 = vpop.f32.mrb[0].mxu0
        %848 = vmatprep.mubr.bf16.mxu0 %v663
        %849 = vmatmul.mubr.bf16.gmra.mrb[0].mxu0 %v662
        %v850 = vpop.f32.mrb[0].mxu0
        %v851 = vadd.f32 0.0, %v850
        %v852 = vpop.f32.mrb[0].mxu0
        %v853 = vpop.f32.mrb[0].mxu0
        %v854 = vadd.f32 0.0, %v853
        %v855 = vpop.f32.mrb[0].mxu0
        %856 = vdwg.mxu0
        %v857 = vpack.c.bf16 %v734, %v731
        %v858 = vpack.c.bf16 %v742, %v739
        %v859 = vpack.c.bf16 %v750, %v747
        %v860 = vpack.c.bf16 %v758, %v755
        %v861 = vpack.c.bf16 %v766, %v763
        %v862 = vpack.c.bf16 %v774, %v771
        %v863 = vpack.c.bf16 %v782, %v779
        %v864 = vpack.c.bf16 %v790, %v787
        %v865 = vpack.c.bf16 %v798, %v795
        %v866 = vpack.c.bf16 %v806, %v803
        %v867 = vpack.c.bf16 %v814, %v811
        %v868 = vpack.c.bf16 %v822, %v819
        %v869 = vpack.c.bf16 %v830, %v827
        %v870 = vpack.c.bf16 %v838, %v835
        %v871 = vpack.c.bf16 %v846, %v843
        %v872 = vpack.c.bf16 %v854, %v851
        %v873 = vld [vmem:[#allocation5] sm:$0xf]
        %v874 = vld [vmem:[#allocation5 + $0x4] sm:$0xf]
        %v875 = vld [vmem:[#allocation5 + $0x8] sm:$0xf]
        %v876 = vld [vmem:[#allocation5 + $0xc] sm:$0xf]
        %v877 = vld [vmem:[#allocation5 + $0x10] sm:$0xf]
        %v878 = vld [vmem:[#allocation5 + $0x14] sm:$0xf]
        %v879 = vld [vmem:[#allocation5 + $0x18] sm:$0xf]
        %v880 = vld [vmem:[#allocation5 + $0x1c] sm:$0xf]
        %v881 = vld [vmem:[#allocation5 + $0x20] sm:$0xf]
        %v882 = vld [vmem:[#allocation5 + $0x24] sm:$0xf]
        %v883 = vld [vmem:[#allocation5 + $0x28] sm:$0xf]
        %v884 = vld [vmem:[#allocation5 + $0x2c] sm:$0xf]
        %v885 = vld [vmem:[#allocation5 + $0x30] sm:$0xf]
        %v886 = vld [vmem:[#allocation5 + $0x34] sm:$0xf]
        %v887 = vld [vmem:[#allocation5 + $0x38] sm:$0xf]
        %v888 = vld [vmem:[#allocation5 + $0x3c] sm:$0xf]
        %v889 = vld [vmem:[#allocation5 + $0x40] sm:$0xf]
        %v890 = vld [vmem:[#allocation5 + $0x44] sm:$0xf]
        %v891 = vld [vmem:[#allocation5 + $0x48] sm:$0xf]
        %v892 = vld [vmem:[#allocation5 + $0x4c] sm:$0xf]
        %v893 = vld [vmem:[#allocation5 + $0x50] sm:$0xf]
        %v894 = vld [vmem:[#allocation5 + $0x54] sm:$0xf]
        %v895 = vld [vmem:[#allocation5 + $0x58] sm:$0xf]
        %v896 = vld [vmem:[#allocation5 + $0x5c] sm:$0xf]
        %v897 = vld [vmem:[#allocation5 + $0x60] sm:$0xf]
        %v898 = vld [vmem:[#allocation5 + $0x64] sm:$0xf]
        %v899 = vld [vmem:[#allocation5 + $0x68] sm:$0xf]
        %v900 = vld [vmem:[#allocation5 + $0x6c] sm:$0xf]
        %v901 = vld [vmem:[#allocation5 + $0x70] sm:$0xf]
        %v902 = vld [vmem:[#allocation5 + $0x74] sm:$0xf]
        %v903 = vld [vmem:[#allocation5 + $0x78] sm:$0xf]
        %v904 = vld [vmem:[#allocation5 + $0x7c] sm:$0xf]
        %v937 = vunpack.c.l.b16 %v873
        %v938 = vunpack.c.l.b16 %v874
        %v939 = vunpack.c.l.b16 %v875
        %v940 = vunpack.c.l.b16 %v876
        %v941 = vunpack.c.l.b16 %v877
        %v942 = vunpack.c.l.b16 %v878
        %v943 = vunpack.c.l.b16 %v879
        %v944 = vunpack.c.l.b16 %v880
        %v945 = vunpack.c.l.b16 %v881
        %v946 = vunpack.c.l.b16 %v882
        %v947 = vunpack.c.l.b16 %v883
        %v948 = vunpack.c.l.b16 %v884
        %v949 = vunpack.c.l.b16 %v885
        %v950 = vunpack.c.l.b16 %v886
        %v951 = vunpack.c.l.b16 %v887
        %v952 = vunpack.c.l.b16 %v888
        %v953 = vunpack.c.l.b16 %v889
        %v954 = vunpack.c.l.b16 %v890
        %v955 = vunpack.c.l.b16 %v891
        %v956 = vunpack.c.l.b16 %v892
        %v957 = vunpack.c.l.b16 %v893
        %v958 = vunpack.c.l.b16 %v894
        %v959 = vunpack.c.l.b16 %v895
        %v960 = vunpack.c.l.b16 %v896
        %v961 = vunpack.c.l.b16 %v897
        %v962 = vunpack.c.l.b16 %v898
        %v963 = vunpack.c.l.b16 %v899
        %v964 = vunpack.c.l.b16 %v900
        %v965 = vunpack.c.l.b16 %v901
        %v966 = vunpack.c.l.b16 %v902
        %v967 = vunpack.c.l.b16 %v903
        %v968 = vunpack.c.l.b16 %v904
        %v969 = vpack.c.b16 %v938, %v937
        %v970 = vpack.c.b16 %v940, %v939
        %v971 = vpack.c.b16 %v942, %v941
        %v972 = vpack.c.b16 %v944, %v943
        %v973 = vpack.c.b16 %v946, %v945
        %v974 = vpack.c.b16 %v948, %v947
        %v975 = vpack.c.b16 %v950, %v949
        %v976 = vpack.c.b16 %v952, %v951
        %v977 = vpack.c.b16 %v954, %v953
        %v978 = vpack.c.b16 %v956, %v955
        %v979 = vpack.c.b16 %v958, %v957
        %v980 = vpack.c.b16 %v960, %v959
        %v981 = vpack.c.b16 %v962, %v961
        %v982 = vpack.c.b16 %v964, %v963
        %v983 = vpack.c.b16 %v966, %v965
        %v984 = vpack.c.b16 %v968, %v967
        %1001 = vmatprep.subr.bf16.mxu0 0
        %1002 = vmatpush1.bf16.msra.mxu0 %v969
        %1003 = vmatprep.subr.bf16.mxu0 0
        %1004 = vmatpush1.bf16.msra.mxu0 %v970
        %1005 = vmatprep.subr.bf16.mxu0 0
        %1006 = vmatpush1.bf16.msra.mxu0 %v971
        %1007 = vmatprep.subr.bf16.mxu0 0
        %1008 = vmatpush1.bf16.msra.mxu0 %v972
        %1009 = vmatprep.subr.bf16.mxu0 0
        %1010 = vmatpush1.bf16.msra.mxu0 %v973
        %1011 = vmatprep.subr.bf16.mxu0 0
        %1012 = vmatpush1.bf16.msra.mxu0 %v974
        %1013 = vmatprep.subr.bf16.mxu0 0
        %1014 = vmatpush1.bf16.msra.mxu0 %v975
        %1015 = vmatprep.subr.bf16.mxu0 0
        %1016 = vmatpush1.bf16.msra.mxu0 %v976
        %1017 = vmatprep.subr.bf16.mxu0 0
        %1018 = vmatpush1.bf16.msra.mxu0 %v977
        %1019 = vmatprep.subr.bf16.mxu0 0
        %1020 = vmatpush1.bf16.msra.mxu0 %v978
        %1021 = vmatprep.subr.bf16.mxu0 0
        %1022 = vmatpush1.bf16.msra.mxu0 %v979
        %1023 = vmatprep.subr.bf16.mxu0 0
        %1024 = vmatpush1.bf16.msra.mxu0 %v980
        %1025 = vmatprep.subr.bf16.mxu0 0
        %1026 = vmatpush1.bf16.msra.mxu0 %v981
        %1027 = vmatprep.subr.bf16.mxu0 0
        %1028 = vmatpush1.bf16.msra.mxu0 %v982
        %1029 = vmatprep.subr.bf16.mxu0 0
        %1030 = vmatpush1.bf16.msra.mxu0 %v983
        %1031 = vmatprep.subr.bf16.mxu0 0
        %1032 = vmatpush1.bf16.msra.mxu0 %v984
        %1033 = vmatprep.mubr.bf16.mxu0 %v865
        %1034 = vmatmul.mubr.bf16.gmra.mrb[0].mxu0 %v857
        %v1035 = vpop.f32.mrb[0].mxu0
        %v1036 = vadd.f32 0.0, %v1035
        %v1037 = vpop.f32.mrb[0].mxu0
        %v1038 = vpop.f32.mrb[0].mxu0
        %v1039 = vadd.f32 0.0, %v1038
        %v1040 = vpop.f32.mrb[0].mxu0
        %1041 = vmatprep.mubr.bf16.mxu0 %v866
        %1042 = vmatmul.mubr.bf16.gmra.mrb[0].mxu0 %v858
        %v1043 = vpop.f32.mrb[0].mxu0
        %v1044 = vadd.f32 0.0, %v1043
        %v1045 = vpop.f32.mrb[0].mxu0
        %v1046 = vpop.f32.mrb[0].mxu0
        %v1047 = vadd.f32 0.0, %v1046
        %v1048 = vpop.f32.mrb[0].mxu0
        %1049 = vmatprep.mubr.bf16.mxu0 %v867
        %1050 = vmatmul.mubr.bf16.gmra.mrb[0].mxu0 %v859
        %v1051 = vpop.f32.mrb[0].mxu0
        %v1052 = vadd.f32 0.0, %v1051
        %v1053 = vpop.f32.mrb[0].mxu0
        %v1054 = vpop.f32.mrb[0].mxu0
        %v1055 = vadd.f32 0.0, %v1054
        %v1056 = vpop.f32.mrb[0].mxu0
        %1057 = vmatprep.mubr.bf16.mxu0 %v868
        %1058 = vmatmul.mubr.bf16.gmra.mrb[0].mxu0 %v860
        %v1059 = vpop.f32.mrb[0].mxu0
        %v1060 = vadd.f32 0.0, %v1059
        %v1061 = vpop.f32.mrb[0].mxu0
        %v1062 = vpop.f32.mrb[0].mxu0
        %v1063 = vadd.f32 0.0, %v1062
        %v1064 = vpop.f32.mrb[0].mxu0
        %1065 = vmatprep.mubr.bf16.mxu0 %v869
        %1066 = vmatmul.mubr.bf16.gmra.mrb[0].mxu0 %v861
        %v1067 = vpop.f32.mrb[0].mxu0
        %v1068 = vadd.f32 0.0, %v1067
        %v1069 = vpop.f32.mrb[0].mxu0
        %v1070 = vpop.f32.mrb[0].mxu0
        %v1071 = vadd.f32 0.0, %v1070
        %v1072 = vpop.f32.mrb[0].mxu0
        %1073 = vmatprep.mubr.bf16.mxu0 %v870
        %1074 = vmatmul.mubr.bf16.gmra.mrb[0].mxu0 %v862
        %v1075 = vpop.f32.mrb[0].mxu0
        %v1076 = vadd.f32 0.0, %v1075
        %v1077 = vpop.f32.mrb[0].mxu0
        %v1078 = vpop.f32.mrb[0].mxu0
        %v1079 = vadd.f32 0.0, %v1078
        %v1080 = vpop.f32.mrb[0].mxu0
        %1081 = vmatprep.mubr.bf16.mxu0 %v871
        %1082 = vmatmul.mubr.bf16.gmra.mrb[0].mxu0 %v863
        %v1083 = vpop.f32.mrb[0].mxu0
        %v1084 = vadd.f32 0.0, %v1083
        %v1085 = vpop.f32.mrb[0].mxu0
        %v1086 = vpop.f32.mrb[0].mxu0
        %v1087 = vadd.f32 0.0, %v1086
        %v1088 = vpop.f32.mrb[0].mxu0
        %1089 = vmatprep.mubr.bf16.mxu0 %v872
        %1090 = vmatmul.mubr.bf16.gmra.mrb[0].mxu0 %v864
        %v1091 = vpop.f32.mrb[0].mxu0
        %v1092 = vadd.f32 0.0, %v1091
        %v1093 = vpop.f32.mrb[0].mxu0
        %v1094 = vpop.f32.mrb[0].mxu0
        %v1095 = vadd.f32 0.0, %v1094
        %v1096 = vpop.f32.mrb[0].mxu0
        %1097 = vdwg.mxu0
        %s1098 = smul.u32 %s34, 128
        %s1099 = scalar_lea.vmem %s453, %s1098
        %v1100 = vld [vmem:[%s1099] sm:$0xff]
        %v1101 = vld [vmem:[%s1099 + $0x8] sm:$0xff]
        %v1102 = vld [vmem:[%s1099 + $0x10] sm:$0xff]
        %v1103 = vld [vmem:[%s1099 + $0x18] sm:$0xff]
        %v1104 = vld [vmem:[%s1099 + $0x20] sm:$0xff]
        %v1105 = vld [vmem:[%s1099 + $0x28] sm:$0xff]
        %v1106 = vld [vmem:[%s1099 + $0x30] sm:$0xff]
        %v1107 = vld [vmem:[%s1099 + $0x38] sm:$0xff]
        %v1108 = vld [vmem:[%s1099 + $0x40] sm:$0xff]
        %v1109 = vld [vmem:[%s1099 + $0x48] sm:$0xff]
        %v1110 = vld [vmem:[%s1099 + $0x50] sm:$0xff]
        %v1111 = vld [vmem:[%s1099 + $0x58] sm:$0xff]
        %v1112 = vld [vmem:[%s1099 + $0x60] sm:$0xff]
        %v1113 = vld [vmem:[%s1099 + $0x68] sm:$0xff]
        %v1114 = vld [vmem:[%s1099 + $0x70] sm:$0xff]
        %v1115 = vld [vmem:[%s1099 + $0x78] sm:$0xff]
        %v1116 = vadd.f32 %v1100, %v1036
        %v1117 = vadd.f32 %v1101, %v1039
        %v1118 = vadd.f32 %v1102, %v1044
        %v1119 = vadd.f32 %v1103, %v1047
        %v1120 = vadd.f32 %v1104, %v1052
        %v1121 = vadd.f32 %v1105, %v1055
        %v1122 = vadd.f32 %v1106, %v1060
        %v1123 = vadd.f32 %v1107, %v1063
        %v1124 = vadd.f32 %v1108, %v1068
        %v1125 = vadd.f32 %v1109, %v1071
        %v1126 = vadd.f32 %v1110, %v1076
        %v1127 = vadd.f32 %v1111, %v1079
        %v1128 = vadd.f32 %v1112, %v1084
        %v1129 = vadd.f32 %v1113, %v1087
        %v1130 = vadd.f32 %v1114, %v1092
        %v1131 = vadd.f32 %v1115, %v1095
        %v1132 = vld [vmem:[%s3] sm:$0x1]
        %v1133 = vld [vmem:[%s4] sm:$0x1]
        %1134 = vadd.xlane.f32.xlu0 %v1116
        %v1135 = vpop.xlane.xlu0 %1134
        %1136 = vadd.xlane.f32.xlu0 %v1117
        %v1137 = vpop.xlane.xlu0 %1136
        %1138 = vadd.xlane.f32.xlu0 %v1118
        %v1139 = vpop.xlane.xlu0 %1138
        %1140 = vadd.xlane.f32.xlu0 %v1119
        %v1141 = vpop.xlane.xlu0 %1140
        %1142 = vadd.xlane.f32.xlu0 %v1120
        %v1143 = vpop.xlane.xlu0 %1142
        %1144 = vadd.xlane.f32.xlu0 %v1121
        %v1145 = vpop.xlane.xlu0 %1144
        %1146 = vadd.xlane.f32.xlu0 %v1122
        %v1147 = vpop.xlane.xlu0 %1146
        %1148 = vadd.xlane.f32.xlu0 %v1123
        %v1149 = vpop.xlane.xlu0 %1148
        %1150 = vadd.xlane.f32.xlu0 %v1124
        %v1151 = vpop.xlane.xlu0 %1150
        %1152 = vadd.xlane.f32.xlu0 %v1125
        %v1153 = vpop.xlane.xlu0 %1152
        %1154 = vadd.xlane.f32.xlu0 %v1126
        %v1155 = vpop.xlane.xlu0 %1154
        %1156 = vadd.xlane.f32.xlu0 %v1127
        %v1157 = vpop.xlane.xlu0 %1156
        %1158 = vadd.xlane.f32.xlu0 %v1128
        %v1159 = vpop.xlane.xlu0 %1158
        %1160 = vadd.xlane.f32.xlu0 %v1129
        %v1161 = vpop.xlane.xlu0 %1160
        %1162 = vadd.xlane.f32.xlu0 %v1130
        %v1163 = vpop.xlane.xlu0 %1162
        %1164 = vadd.xlane.f32.xlu0 %v1131
        %v1165 = vpop.xlane.xlu0 %1164
        %v1166 = vrcp.pop 128.0
        %v1167 = vmul.f32 %v1135, %v1166
        %v1168 = vmul.f32 %v1137, %v1166
        %v1169 = vmul.f32 %v1139, %v1166
        %v1170 = vmul.f32 %v1141, %v1166
        %v1171 = vmul.f32 %v1143, %v1166
        %v1172 = vmul.f32 %v1145, %v1166
        %v1173 = vmul.f32 %v1147, %v1166
        %v1174 = vmul.f32 %v1149, %v1166
        %v1175 = vmul.f32 %v1151, %v1166
        %v1176 = vmul.f32 %v1153, %v1166
        %v1177 = vmul.f32 %v1155, %v1166
        %v1178 = vmul.f32 %v1157, %v1166
        %v1179 = vmul.f32 %v1159, %v1166
        %v1180 = vmul.f32 %v1161, %v1166
        %v1181 = vmul.f32 %v1163, %v1166
        %v1182 = vmul.f32 %v1165, %v1166
        %v1183 = vsub.f32 %v1116, %v1167
        %v1184 = vsub.f32 %v1117, %v1168
        %v1185 = vsub.f32 %v1118, %v1169
        %v1186 = vsub.f32 %v1119, %v1170
        %v1187 = vsub.f32 %v1120, %v1171
        %v1188 = vsub.f32 %v1121, %v1172
        %v1189 = vsub.f32 %v1122, %v1173
        %v1190 = vsub.f32 %v1123, %v1174
        %v1191 = vsub.f32 %v1124, %v1175
        %v1192 = vsub.f32 %v1125, %v1176
        %v1193 = vsub.f32 %v1126, %v1177
        %v1194 = vsub.f32 %v1127, %v1178
        %v1195 = vsub.f32 %v1128, %v1179
        %v1196 = vsub.f32 %v1129, %v1180
        %v1197 = vsub.f32 %v1130, %v1181
        %v1198 = vsub.f32 %v1131, %v1182
        %v1199 = vmul.f32 %v1183, %v1183
        %v1200 = vmul.f32 %v1184, %v1184
        %v1201 = vmul.f32 %v1185, %v1185
        %v1202 = vmul.f32 %v1186, %v1186
        %v1203 = vmul.f32 %v1187, %v1187
        %v1204 = vmul.f32 %v1188, %v1188
        %v1205 = vmul.f32 %v1189, %v1189
        %v1206 = vmul.f32 %v1190, %v1190
        %v1207 = vmul.f32 %v1191, %v1191
        %v1208 = vmul.f32 %v1192, %v1192
        %v1209 = vmul.f32 %v1193, %v1193
        %v1210 = vmul.f32 %v1194, %v1194
        %v1211 = vmul.f32 %v1195, %v1195
        %v1212 = vmul.f32 %v1196, %v1196
        %v1213 = vmul.f32 %v1197, %v1197
        %v1214 = vmul.f32 %v1198, %v1198
        %1215 = vadd.xlane.f32.xlu0 %v1199
        %v1216 = vpop.xlane.xlu0 %1215
        %1217 = vadd.xlane.f32.xlu0 %v1200
        %v1218 = vpop.xlane.xlu0 %1217
        %1219 = vadd.xlane.f32.xlu0 %v1201
        %v1220 = vpop.xlane.xlu0 %1219
        %1221 = vadd.xlane.f32.xlu0 %v1202
        %v1222 = vpop.xlane.xlu0 %1221
        %1223 = vadd.xlane.f32.xlu0 %v1203
        %v1224 = vpop.xlane.xlu0 %1223
        %1225 = vadd.xlane.f32.xlu0 %v1204
        %v1226 = vpop.xlane.xlu0 %1225
        %1227 = vadd.xlane.f32.xlu0 %v1205
        %v1228 = vpop.xlane.xlu0 %1227
        %1229 = vadd.xlane.f32.xlu0 %v1206
        %v1230 = vpop.xlane.xlu0 %1229
        %1231 = vadd.xlane.f32.xlu0 %v1207
        %v1232 = vpop.xlane.xlu0 %1231
        %1233 = vadd.xlane.f32.xlu0 %v1208
        %v1234 = vpop.xlane.xlu0 %1233
        %1235 = vadd.xlane.f32.xlu0 %v1209
        %v1236 = vpop.xlane.xlu0 %1235
        %1237 = vadd.xlane.f32.xlu0 %v1210
        %v1238 = vpop.xlane.xlu0 %1237
        %1239 = vadd.xlane.f32.xlu0 %v1211
        %v1240 = vpop.xlane.xlu0 %1239
        %1241 = vadd.xlane.f32.xlu0 %v1212
        %v1242 = vpop.xlane.xlu0 %1241
        %1243 = vadd.xlane.f32.xlu0 %v1213
        %v1244 = vpop.xlane.xlu0 %1243
        %1245 = vadd.xlane.f32.xlu0 %v1214
        %v1246 = vpop.xlane.xlu0 %1245
        %v1247 = vmul.f32 %v1216, %v1166
        %v1248 = vmul.f32 %v1218, %v1166
        %v1249 = vmul.f32 %v1220, %v1166
        %v1250 = vmul.f32 %v1222, %v1166
        %v1251 = vmul.f32 %v1224, %v1166
        %v1252 = vmul.f32 %v1226, %v1166
        %v1253 = vmul.f32 %v1228, %v1166
        %v1254 = vmul.f32 %v1230, %v1166
        %v1255 = vmul.f32 %v1232, %v1166
        %v1256 = vmul.f32 %v1234, %v1166
        %v1257 = vmul.f32 %v1236, %v1166
        %v1258 = vmul.f32 %v1238, %v1166
        %v1259 = vmul.f32 %v1240, %v1166
        %v1260 = vmul.f32 %v1242, %v1166
        %v1261 = vmul.f32 %v1244, %v1166
        %v1262 = vmul.f32 %v1246, %v1166
        %v1263 = vadd.f32 %v1247, 1e-05
        %v1264 = vadd.f32 %v1248, 1e-05
        %v1265 = vadd.f32 %v1249, 1e-05
        %v1266 = vadd.f32 %v1250, 1e-05
        %v1267 = vadd.f32 %v1251, 1e-05
        %v1268 = vadd.f32 %v1252, 1e-05
        %v1269 = vadd.f32 %v1253, 1e-05
        %v1270 = vadd.f32 %v1254, 1e-05
        %v1271 = vadd.f32 %v1255, 1e-05
        %v1272 = vadd.f32 %v1256, 1e-05
        %v1273 = vadd.f32 %v1257, 1e-05
        %v1274 = vadd.f32 %v1258, 1e-05
        %v1275 = vadd.f32 %v1259, 1e-05
        %v1276 = vadd.f32 %v1260, 1e-05
        %v1277 = vadd.f32 %v1261, 1e-05
        %v1278 = vadd.f32 %v1262, 1e-05
        %v1279 = vrsqrt.pop %v1263
        %v1280 = vrsqrt.pop %v1264
        %v1281 = vrsqrt.pop %v1265
        %v1282 = vrsqrt.pop %v1266
        %v1283 = vrsqrt.pop %v1267
        %v1284 = vrsqrt.pop %v1268
        %v1285 = vrsqrt.pop %v1269
        %v1286 = vrsqrt.pop %v1270
        %v1287 = vrsqrt.pop %v1271
        %v1288 = vrsqrt.pop %v1272
        %v1289 = vrsqrt.pop %v1273
        %v1290 = vrsqrt.pop %v1274
        %v1291 = vrsqrt.pop %v1275
        %v1292 = vrsqrt.pop %v1276
        %v1293 = vrsqrt.pop %v1277
        %v1294 = vrsqrt.pop %v1278
        %v1295 = vmul.f32 %v1183, %v1279
        %v1296 = vmul.f32 %v1184, %v1280
        %v1297 = vmul.f32 %v1185, %v1281
        %v1298 = vmul.f32 %v1186, %v1282
        %v1299 = vmul.f32 %v1187, %v1283
        %v1300 = vmul.f32 %v1188, %v1284
        %v1301 = vmul.f32 %v1189, %v1285
        %v1302 = vmul.f32 %v1190, %v1286
        %v1303 = vmul.f32 %v1191, %v1287
        %v1304 = vmul.f32 %v1192, %v1288
        %v1305 = vmul.f32 %v1193, %v1289
        %v1306 = vmul.f32 %v1194, %v1290
        %v1307 = vmul.f32 %v1195, %v1291
        %v1308 = vmul.f32 %v1196, %v1292
        %v1309 = vmul.f32 %v1197, %v1293
        %v1310 = vmul.f32 %v1198, %v1294
        %v1312 = vlaneseq
        %v1313 = vshrl.u32 %v1312, 7
        %v1314 = vsub.s32 0, %v1313
        %v1315 = vrot.slane %v1132, %v1314
        %v1317 = vmul.f32 %v1295, %v1315
        %v1318 = vmul.f32 %v1296, %v1315
        %v1319 = vmul.f32 %v1297, %v1315
        %v1320 = vmul.f32 %v1298, %v1315
        %v1321 = vmul.f32 %v1299, %v1315
        %v1322 = vmul.f32 %v1300, %v1315
        %v1323 = vmul.f32 %v1301, %v1315
        %v1324 = vmul.f32 %v1302, %v1315
        %v1325 = vmul.f32 %v1303, %v1315
        %v1326 = vmul.f32 %v1304, %v1315
        %v1327 = vmul.f32 %v1305, %v1315
        %v1328 = vmul.f32 %v1306, %v1315
        %v1329 = vmul.f32 %v1307, %v1315
        %v1330 = vmul.f32 %v1308, %v1315
        %v1331 = vmul.f32 %v1309, %v1315
        %v1332 = vmul.f32 %v1310, %v1315
        %v1334 = vlaneseq
        %v1335 = vshrl.u32 %v1334, 7
        %v1336 = vsub.s32 0, %v1335
        %v1337 = vrot.slane %v1133, %v1336
        %v1339 = vadd.f32 %v1317, %v1337
        %v1340 = vadd.f32 %v1318, %v1337
        %v1341 = vadd.f32 %v1319, %v1337
        %v1342 = vadd.f32 %v1320, %v1337
        %v1343 = vadd.f32 %v1321, %v1337
        %v1344 = vadd.f32 %v1322, %v1337
        %v1345 = vadd.f32 %v1323, %v1337
        %v1346 = vadd.f32 %v1324, %v1337
        %v1347 = vadd.f32 %v1325, %v1337
        %v1348 = vadd.f32 %v1326, %v1337
        %v1349 = vadd.f32 %v1327, %v1337
        %v1350 = vadd.f32 %v1328, %v1337
        %v1351 = vadd.f32 %v1329, %v1337
        %v1352 = vadd.f32 %v1330, %v1337
        %v1353 = vadd.f32 %v1331, %v1337
        %v1354 = vadd.f32 %v1332, %v1337
        %v1355 = vpack.c.bf16 %v1340, %v1339
        %v1356 = vpack.c.bf16 %v1342, %v1341
        %v1357 = vpack.c.bf16 %v1344, %v1343
        %v1358 = vpack.c.bf16 %v1346, %v1345
        %v1359 = vpack.c.bf16 %v1348, %v1347
        %v1360 = vpack.c.bf16 %v1350, %v1349
        %v1361 = vpack.c.bf16 %v1352, %v1351
        %v1362 = vpack.c.bf16 %v1354, %v1353
        %v1363 = vld [vmem:[%s5] sm:$0xff]
        %v1364 = vld [vmem:[%s5 + $0x8] sm:$0xff]
        %v1365 = vld [vmem:[%s5 + $0x10] sm:$0xff]
        %v1366 = vld [vmem:[%s5 + $0x18] sm:$0xff]
        %v1367 = vld [vmem:[%s5 + $0x20] sm:$0xff]
        %v1368 = vld [vmem:[%s5 + $0x28] sm:$0xff]
        %v1369 = vld [vmem:[%s5 + $0x30] sm:$0xff]
        %v1370 = vld [vmem:[%s5 + $0x38] sm:$0xff]
        %v1371 = vld [vmem:[%s5 + $0x40] sm:$0xff]
        %v1372 = vld [vmem:[%s5 + $0x48] sm:$0xff]
        %v1373 = vld [vmem:[%s5 + $0x50] sm:$0xff]
        %v1374 = vld [vmem:[%s5 + $0x58] sm:$0xff]
        %v1375 = vld [vmem:[%s5 + $0x60] sm:$0xff]
        %v1376 = vld [vmem:[%s5 + $0x68] sm:$0xff]
        %v1377 = vld [vmem:[%s5 + $0x70] sm:$0xff]
        %v1378 = vld [vmem:[%s5 + $0x78] sm:$0xff]
        %v1379 = vld [vmem:[%s6] sm:$0x3]
        %v1381 = vlaneseq
        %v1382 = vshrl.u32 %v1381, 7
        %v1383 = vsub.s32 0, %v1382
        %v1384 = vrot.slane %v1379, %v1383
        %v1385 = vlaneseq
        %v1386 = vshrl.u32 %v1385, 7
        %v1387 = vsub.s32 1, %v1386
        %v1388 = vrot.slane %v1379, %v1387
        %v1407 = vunpack.c.l.b16 %v1363
        %v1408 = vunpack.c.h.b16 %v1363
        %v1409 = vunpack.c.l.b16 %v1364
        %v1410 = vunpack.c.h.b16 %v1364
        %v1411 = vunpack.c.l.b16 %v1365
        %v1412 = vunpack.c.h.b16 %v1365
        %v1413 = vunpack.c.l.b16 %v1366
        %v1414 = vunpack.c.h.b16 %v1366
        %v1415 = vunpack.c.l.b16 %v1367
        %v1416 = vunpack.c.h.b16 %v1367
        %v1417 = vunpack.c.l.b16 %v1368
        %v1418 = vunpack.c.h.b16 %v1368
        %v1419 = vunpack.c.l.b16 %v1369
        %v1420 = vunpack.c.h.b16 %v1369
        %v1421 = vunpack.c.l.b16 %v1370
        %v1422 = vunpack.c.h.b16 %v1370
        %v1423 = vunpack.c.l.b16 %v1371
        %v1424 = vunpack.c.h.b16 %v1371
        %v1425 = vunpack.c.l.b16 %v1372
        %v1426 = vunpack.c.h.b16 %v1372
        %v1427 = vunpack.c.l.b16 %v1373
        %v1428 = vunpack.c.h.b16 %v1373
        %v1429 = vunpack.c.l.b16 %v1374
        %v1430 = vunpack.c.h.b16 %v1374
        %v1431 = vunpack.c.l.b16 %v1375
        %v1432 = vunpack.c.h.b16 %v1375
        %v1433 = vunpack.c.l.b16 %v1376
        %v1434 = vunpack.c.h.b16 %v1376
        %v1435 = vunpack.c.l.b16 %v1377
        %v1436 = vunpack.c.h.b16 %v1377
        %v1437 = vunpack.c.l.b16 %v1378
        %v1438 = vunpack.c.h.b16 %v1378
        %v1439 = vpack.c.b16 %v1409, %v1407
        %v1440 = vpack.c.b16 %v1410, %v1408
        %v1441 = vpack.c.b16 %v1413, %v1411
        %v1442 = vpack.c.b16 %v1414, %v1412
        %v1443 = vpack.c.b16 %v1417, %v1415
        %v1444 = vpack.c.b16 %v1418, %v1416
        %v1445 = vpack.c.b16 %v1421, %v1419
        %v1446 = vpack.c.b16 %v1422, %v1420
        %v1447 = vpack.c.b16 %v1425, %v1423
        %v1448 = vpack.c.b16 %v1426, %v1424
        %v1449 = vpack.c.b16 %v1429, %v1427
        %v1450 = vpack.c.b16 %v1430, %v1428
        %v1451 = vpack.c.b16 %v1433, %v1431
        %v1452 = vpack.c.b16 %v1434, %v1432
        %v1453 = vpack.c.b16 %v1437, %v1435
        %v1454 = vpack.c.b16 %v1438, %v1436
        %1471 = vmatprep.subr.bf16.mxu0 %v1440
        %1472 = vmatpush1.bf16.msra.mxu0 %v1439
        %1473 = vmatprep.subr.bf16.mxu0 %v1442
        %1474 = vmatpush1.bf16.msra.mxu0 %v1441
        %1475 = vmatprep.subr.bf16.mxu0 %v1444
        %1476 = vmatpush1.bf16.msra.mxu0 %v1443
        %1477 = vmatprep.subr.bf16.mxu0 %v1446
        %1478 = vmatpush1.bf16.msra.mxu0 %v1445
        %1479 = vmatprep.subr.bf16.mxu0 %v1448
        %1480 = vmatpush1.bf16.msra.mxu0 %v1447
        %1481 = vmatprep.subr.bf16.mxu0 %v1450
        %1482 = vmatpush1.bf16.msra.mxu0 %v1449
        %1483 = vmatprep.subr.bf16.mxu0 %v1452
        %1484 = vmatpush1.bf16.msra.mxu0 %v1451
        %1485 = vmatprep.subr.bf16.mxu0 %v1454
        %1486 = vmatpush1.bf16.msra.mxu0 %v1453
        %1487 = vmatprep.subr.bf16.mxu0 0
        %1488 = vmatpush1.bf16.msra.mxu0 0
        %1489 = vmatprep.subr.bf16.mxu0 0
        %1490 = vmatpush1.bf16.msra.mxu0 0
        %1491 = vmatprep.subr.bf16.mxu0 0
        %1492 = vmatpush1.bf16.msra.mxu0 0
        %1493 = vmatprep.subr.bf16.mxu0 0
        %1494 = vmatpush1.bf16.msra.mxu0 0
        %1495 = vmatprep.subr.bf16.mxu0 0
        %1496 = vmatpush1.bf16.msra.mxu0 0
        %1497 = vmatprep.subr.bf16.mxu0 0
        %1498 = vmatpush1.bf16.msra.mxu0 0
        %1499 = vmatprep.subr.bf16.mxu0 0
        %1500 = vmatpush1.bf16.msra.mxu0 0
        %1501 = vmatprep.subr.bf16.mxu0 0
        %1502 = vmatpush1.bf16.msra.mxu0 0
        %1503 = vmatprep.mubr.bf16.mxu0 0
        %1504 = vmatmul.mubr.bf16.gmra.mrb[0].mxu0 %v1355
        %v1505 = vpop.f32.mrb[0].mxu0
        %v1506 = vadd.f32 %v1384, %v1505
        %v1507 = vpop.f32.mrb[0].mxu0
        %v1508 = vadd.f32 %v1388, %v1507
        %v1509 = vpop.f32.mrb[0].mxu0
        %v1510 = vadd.f32 %v1384, %v1509
        %v1511 = vpop.f32.mrb[0].mxu0
        %v1512 = vadd.f32 %v1388, %v1511
        %1513 = vmatprep.mubr.bf16.mxu0 0
        %1514 = vmatmul.mubr.bf16.gmra.mrb[0].mxu0 %v1356
        %v1515 = vpop.f32.mrb[0].mxu0
        %v1516 = vadd.f32 %v1384, %v1515
        %v1517 = vpop.f32.mrb[0].mxu0
        %v1518 = vadd.f32 %v1388, %v1517
        %v1519 = vpop.f32.mrb[0].mxu0
        %v1520 = vadd.f32 %v1384, %v1519
        %v1521 = vpop.f32.mrb[0].mxu0
        %v1522 = vadd.f32 %v1388, %v1521
        %1523 = vmatprep.mubr.bf16.mxu0 0
        %1524 = vmatmul.mubr.bf16.gmra.mrb[0].mxu0 %v1357
        %v1525 = vpop.f32.mrb[0].mxu0
        %v1526 = vadd.f32 %v1384, %v1525
        %v1527 = vpop.f32.mrb[0].mxu0
        %v1528 = vadd.f32 %v1388, %v1527
        %v1529 = vpop.f32.mrb[0].mxu0
        %v1530 = vadd.f32 %v1384, %v1529
        %v1531 = vpop.f32.mrb[0].mxu0
        %v1532 = vadd.f32 %v1388, %v1531
        %1533 = vmatprep.mubr.bf16.mxu0 0
        %1534 = vmatmul.mubr.bf16.gmra.mrb[0].mxu0 %v1358
        %v1535 = vpop.f32.mrb[0].mxu0
        %v1536 = vadd.f32 %v1384, %v1535
        %v1537 = vpop.f32.mrb[0].mxu0
        %v1538 = vadd.f32 %v1388, %v1537
        %v1539 = vpop.f32.mrb[0].mxu0
        %v1540 = vadd.f32 %v1384, %v1539
        %v1541 = vpop.f32.mrb[0].mxu0
        %v1542 = vadd.f32 %v1388, %v1541
        %1543 = vmatprep.mubr.bf16.mxu0 0
        %1544 = vmatmul.mubr.bf16.gmra.mrb[0].mxu0 %v1359
        %v1545 = vpop.f32.mrb[0].mxu0
        %v1546 = vadd.f32 %v1384, %v1545
        %v1547 = vpop.f32.mrb[0].mxu0
        %v1548 = vadd.f32 %v1388, %v1547
        %v1549 = vpop.f32.mrb[0].mxu0
        %v1550 = vadd.f32 %v1384, %v1549
        %v1551 = vpop.f32.mrb[0].mxu0
        %v1552 = vadd.f32 %v1388, %v1551
        %1553 = vmatprep.mubr.bf16.mxu0 0
        %1554 = vmatmul.mubr.bf16.gmra.mrb[0].mxu0 %v1360
        %v1555 = vpop.f32.mrb[0].mxu0
        %v1556 = vadd.f32 %v1384, %v1555
        %v1557 = vpop.f32.mrb[0].mxu0
        %v1558 = vadd.f32 %v1388, %v1557
        %v1559 = vpop.f32.mrb[0].mxu0
        %v1560 = vadd.f32 %v1384, %v1559
        %v1561 = vpop.f32.mrb[0].mxu0
        %v1562 = vadd.f32 %v1388, %v1561
        %1563 = vmatprep.mubr.bf16.mxu0 0
        %1564 = vmatmul.mubr.bf16.gmra.mrb[0].mxu0 %v1361
        %v1565 = vpop.f32.mrb[0].mxu0
        %v1566 = vadd.f32 %v1384, %v1565
        %v1567 = vpop.f32.mrb[0].mxu0
        %v1568 = vadd.f32 %v1388, %v1567
        %v1569 = vpop.f32.mrb[0].mxu0
        %v1570 = vadd.f32 %v1384, %v1569
        %v1571 = vpop.f32.mrb[0].mxu0
        %v1572 = vadd.f32 %v1388, %v1571
        %1573 = vmatprep.mubr.bf16.mxu0 0
        %1574 = vmatmul.mubr.bf16.gmra.mrb[0].mxu0 %v1362
        %v1575 = vpop.f32.mrb[0].mxu0
        %v1576 = vadd.f32 %v1384, %v1575
        %v1577 = vpop.f32.mrb[0].mxu0
        %v1578 = vadd.f32 %v1388, %v1577
        %v1579 = vpop.f32.mrb[0].mxu0
        %v1580 = vadd.f32 %v1384, %v1579
        %v1581 = vpop.f32.mrb[0].mxu0
        %v1582 = vadd.f32 %v1388, %v1581
        %1583 = vdwg.mxu0
        %v1584 = vmax.f32 %v1506, 0.0
        %v1585 = vmax.f32 %v1508, 0.0
        %v1586 = vmax.f32 %v1510, 0.0
        %v1587 = vmax.f32 %v1512, 0.0
        %v1588 = vmax.f32 %v1516, 0.0
        %v1589 = vmax.f32 %v1518, 0.0
        %v1590 = vmax.f32 %v1520, 0.0
        %v1591 = vmax.f32 %v1522, 0.0
        %v1592 = vmax.f32 %v1526, 0.0
        %v1593 = vmax.f32 %v1528, 0.0
        %v1594 = vmax.f32 %v1530, 0.0
        %v1595 = vmax.f32 %v1532, 0.0
        %v1596 = vmax.f32 %v1536, 0.0
        %v1597 = vmax.f32 %v1538, 0.0
        %v1598 = vmax.f32 %v1540, 0.0
        %v1599 = vmax.f32 %v1542, 0.0
        %v1600 = vmax.f32 %v1546, 0.0
        %v1601 = vmax.f32 %v1548, 0.0
        %v1602 = vmax.f32 %v1550, 0.0
        %v1603 = vmax.f32 %v1552, 0.0
        %v1604 = vmax.f32 %v1556, 0.0
        %v1605 = vmax.f32 %v1558, 0.0
        %v1606 = vmax.f32 %v1560, 0.0
        %v1607 = vmax.f32 %v1562, 0.0
        %v1608 = vmax.f32 %v1566, 0.0
        %v1609 = vmax.f32 %v1568, 0.0
        %v1610 = vmax.f32 %v1570, 0.0
        %v1611 = vmax.f32 %v1572, 0.0
        %v1612 = vmax.f32 %v1576, 0.0
        %v1613 = vmax.f32 %v1578, 0.0
        %v1614 = vmax.f32 %v1580, 0.0
        %v1615 = vmax.f32 %v1582, 0.0
        %v1616 = vpack.c.bf16 %v1586, %v1584
        %v1617 = vpack.c.bf16 %v1587, %v1585
        %v1618 = vpack.c.bf16 %v1590, %v1588
        %v1619 = vpack.c.bf16 %v1591, %v1589
        %v1620 = vpack.c.bf16 %v1594, %v1592
        %v1621 = vpack.c.bf16 %v1595, %v1593
        %v1622 = vpack.c.bf16 %v1598, %v1596
        %v1623 = vpack.c.bf16 %v1599, %v1597
        %v1624 = vpack.c.bf16 %v1602, %v1600
        %v1625 = vpack.c.bf16 %v1603, %v1601
        %v1626 = vpack.c.bf16 %v1606, %v1604
        %v1627 = vpack.c.bf16 %v1607, %v1605
        %v1628 = vpack.c.bf16 %v1610, %v1608
        %v1629 = vpack.c.bf16 %v1611, %v1609
        %v1630 = vpack.c.bf16 %v1614, %v1612
        %v1631 = vpack.c.bf16 %v1615, %v1613
        %v1632 = vld [vmem:[%s7] sm:$0xf]
        %v1633 = vld [vmem:[%s7 + $0x4] sm:$0xf]
        %v1634 = vld [vmem:[%s7 + $0x8] sm:$0xf]
        %v1635 = vld [vmem:[%s7 + $0xc] sm:$0xf]
        %v1636 = vld [vmem:[%s7 + $0x10] sm:$0xf]
        %v1637 = vld [vmem:[%s7 + $0x14] sm:$0xf]
        %v1638 = vld [vmem:[%s7 + $0x18] sm:$0xf]
        %v1639 = vld [vmem:[%s7 + $0x1c] sm:$0xf]
        %v1640 = vld [vmem:[%s7 + $0x20] sm:$0xf]
        %v1641 = vld [vmem:[%s7 + $0x24] sm:$0xf]
        %v1642 = vld [vmem:[%s7 + $0x28] sm:$0xf]
        %v1643 = vld [vmem:[%s7 + $0x2c] sm:$0xf]
        %v1644 = vld [vmem:[%s7 + $0x30] sm:$0xf]
        %v1645 = vld [vmem:[%s7 + $0x34] sm:$0xf]
        %v1646 = vld [vmem:[%s7 + $0x38] sm:$0xf]
        %v1647 = vld [vmem:[%s7 + $0x3c] sm:$0xf]
        %v1648 = vld [vmem:[%s7 + $0x40] sm:$0xf]
        %v1649 = vld [vmem:[%s7 + $0x44] sm:$0xf]
        %v1650 = vld [vmem:[%s7 + $0x48] sm:$0xf]
        %v1651 = vld [vmem:[%s7 + $0x4c] sm:$0xf]
        %v1652 = vld [vmem:[%s7 + $0x50] sm:$0xf]
        %v1653 = vld [vmem:[%s7 + $0x54] sm:$0xf]
        %v1654 = vld [vmem:[%s7 + $0x58] sm:$0xf]
        %v1655 = vld [vmem:[%s7 + $0x5c] sm:$0xf]
        %v1656 = vld [vmem:[%s7 + $0x60] sm:$0xf]
        %v1657 = vld [vmem:[%s7 + $0x64] sm:$0xf]
        %v1658 = vld [vmem:[%s7 + $0x68] sm:$0xf]
        %v1659 = vld [vmem:[%s7 + $0x6c] sm:$0xf]
        %v1660 = vld [vmem:[%s7 + $0x70] sm:$0xf]
        %v1661 = vld [vmem:[%s7 + $0x74] sm:$0xf]
        %v1662 = vld [vmem:[%s7 + $0x78] sm:$0xf]
        %v1663 = vld [vmem:[%s7 + $0x7c] sm:$0xf]
        %v1664 = vld [vmem:[%s8] sm:$0x1]
        %v1666 = vlaneseq
        %v1667 = vshrl.u32 %v1666, 7
        %v1668 = vsub.s32 0, %v1667
        %v1669 = vrot.slane %v1664, %v1668
        %v1703 = vunpack.c.l.b16 %v1632
        %v1704 = vunpack.c.l.b16 %v1633
        %v1705 = vunpack.c.l.b16 %v1634
        %v1706 = vunpack.c.l.b16 %v1635
        %v1707 = vunpack.c.l.b16 %v1636
        %v1708 = vunpack.c.l.b16 %v1637
        %v1709 = vunpack.c.l.b16 %v1638
        %v1710 = vunpack.c.l.b16 %v1639
        %v1711 = vunpack.c.l.b16 %v1640
        %v1712 = vunpack.c.l.b16 %v1641
        %v1713 = vunpack.c.l.b16 %v1642
        %v1714 = vunpack.c.l.b16 %v1643
        %v1715 = vunpack.c.l.b16 %v1644
        %v1716 = vunpack.c.l.b16 %v1645
        %v1717 = vunpack.c.l.b16 %v1646
        %v1718 = vunpack.c.l.b16 %v1647
        %v1719 = vunpack.c.l.b16 %v1648
        %v1720 = vunpack.c.l.b16 %v1649
        %v1721 = vunpack.c.l.b16 %v1650
        %v1722 = vunpack.c.l.b16 %v1651
        %v1723 = vunpack.c.l.b16 %v1652
        %v1724 = vunpack.c.l.b16 %v1653
        %v1725 = vunpack.c.l.b16 %v1654
        %v1726 = vunpack.c.l.b16 %v1655
        %v1727 = vunpack.c.l.b16 %v1656
        %v1728 = vunpack.c.l.b16 %v1657
        %v1729 = vunpack.c.l.b16 %v1658
        %v1730 = vunpack.c.l.b16 %v1659
        %v1731 = vunpack.c.l.b16 %v1660
        %v1732 = vunpack.c.l.b16 %v1661
        %v1733 = vunpack.c.l.b16 %v1662
        %v1734 = vunpack.c.l.b16 %v1663
        %v1735 = vpack.c.b16 %v1704, %v1703
        %v1736 = vpack.c.b16 %v1706, %v1705
        %v1737 = vpack.c.b16 %v1708, %v1707
        %v1738 = vpack.c.b16 %v1710, %v1709
        %v1739 = vpack.c.b16 %v1712, %v1711
        %v1740 = vpack.c.b16 %v1714, %v1713
        %v1741 = vpack.c.b16 %v1716, %v1715
        %v1742 = vpack.c.b16 %v1718, %v1717
        %v1743 = vpack.c.b16 %v1720, %v1719
        %v1744 = vpack.c.b16 %v1722, %v1721
        %v1745 = vpack.c.b16 %v1724, %v1723
        %v1746 = vpack.c.b16 %v1726, %v1725
        %v1747 = vpack.c.b16 %v1728, %v1727
        %v1748 = vpack.c.b16 %v1730, %v1729
        %v1749 = vpack.c.b16 %v1732, %v1731
        %v1750 = vpack.c.b16 %v1734, %v1733
        %1767 = vmatprep.subr.bf16.mxu0 0
        %1768 = vmatpush1.bf16.msra.mxu0 %v1735
        %1769 = vmatprep.subr.bf16.mxu0 0
        %1770 = vmatpush1.bf16.msra.mxu0 %v1736
        %1771 = vmatprep.subr.bf16.mxu0 0
        %1772 = vmatpush1.bf16.msra.mxu0 %v1737
        %1773 = vmatprep.subr.bf16.mxu0 0
        %1774 = vmatpush1.bf16.msra.mxu0 %v1738
        %1775 = vmatprep.subr.bf16.mxu0 0
        %1776 = vmatpush1.bf16.msra.mxu0 %v1739
        %1777 = vmatprep.subr.bf16.mxu0 0
        %1778 = vmatpush1.bf16.msra.mxu0 %v1740
        %1779 = vmatprep.subr.bf16.mxu0 0
        %1780 = vmatpush1.bf16.msra.mxu0 %v1741
        %1781 = vmatprep.subr.bf16.mxu0 0
        %1782 = vmatpush1.bf16.msra.mxu0 %v1742
        %1783 = vmatprep.subr.bf16.mxu0 0
        %1784 = vmatpush1.bf16.msra.mxu0 %v1743
        %1785 = vmatprep.subr.bf16.mxu0 0
        %1786 = vmatpush1.bf16.msra.mxu0 %v1744
        %1787 = vmatprep.subr.bf16.mxu0 0
        %1788 = vmatpush1.bf16.msra.mxu0 %v1745
        %1789 = vmatprep.subr.bf16.mxu0 0
        %1790 = vmatpush1.bf16.msra.mxu0 %v1746
        %1791 = vmatprep.subr.bf16.mxu0 0
        %1792 = vmatpush1.bf16.msra.mxu0 %v1747
        %1793 = vmatprep.subr.bf16.mxu0 0
        %1794 = vmatpush1.bf16.msra.mxu0 %v1748
        %1795 = vmatprep.subr.bf16.mxu0 0
        %1796 = vmatpush1.bf16.msra.mxu0 %v1749
        %1797 = vmatprep.subr.bf16.mxu0 0
        %1798 = vmatpush1.bf16.msra.mxu0 %v1750
        %1799 = vmatprep.mubr.bf16.mxu0 %v1617
        %1800 = vmatmul.mubr.bf16.gmra.mrb[0].mxu0 %v1616
        %v1801 = vpop.f32.mrb[0].mxu0
        %v1802 = vadd.f32 %v1669, %v1801
        %v1803 = vpop.f32.mrb[0].mxu0
        %v1804 = vpop.f32.mrb[0].mxu0
        %v1805 = vadd.f32 %v1669, %v1804
        %v1806 = vpop.f32.mrb[0].mxu0
        %1807 = vmatprep.mubr.bf16.mxu0 %v1619
        %1808 = vmatmul.mubr.bf16.gmra.mrb[0].mxu0 %v1618
        %v1809 = vpop.f32.mrb[0].mxu0
        %v1810 = vadd.f32 %v1669, %v1809
        %v1811 = vpop.f32.mrb[0].mxu0
        %v1812 = vpop.f32.mrb[0].mxu0
        %v1813 = vadd.f32 %v1669, %v1812
        %v1814 = vpop.f32.mrb[0].mxu0
        %1815 = vmatprep.mubr.bf16.mxu0 %v1621
        %1816 = vmatmul.mubr.bf16.gmra.mrb[0].mxu0 %v1620
        %v1817 = vpop.f32.mrb[0].mxu0
        %v1818 = vadd.f32 %v1669, %v1817
        %v1819 = vpop.f32.mrb[0].mxu0
        %v1820 = vpop.f32.mrb[0].mxu0
        %v1821 = vadd.f32 %v1669, %v1820
        %v1822 = vpop.f32.mrb[0].mxu0
        %1823 = vmatprep.mubr.bf16.mxu0 %v1623
        %1824 = vmatmul.mubr.bf16.gmra.mrb[0].mxu0 %v1622
        %v1825 = vpop.f32.mrb[0].mxu0
        %v1826 = vadd.f32 %v1669, %v1825
        %v1827 = vpop.f32.mrb[0].mxu0
        %v1828 = vpop.f32.mrb[0].mxu0
        %v1829 = vadd.f32 %v1669, %v1828
        %v1830 = vpop.f32.mrb[0].mxu0
        %1831 = vmatprep.mubr.bf16.mxu0 %v1625
        %1832 = vmatmul.mubr.bf16.gmra.mrb[0].mxu0 %v1624
        %v1833 = vpop.f32.mrb[0].mxu0
        %v1834 = vadd.f32 %v1669, %v1833
        %v1835 = vpop.f32.mrb[0].mxu0
        %v1836 = vpop.f32.mrb[0].mxu0
        %v1837 = vadd.f32 %v1669, %v1836
        %v1838 = vpop.f32.mrb[0].mxu0
        %1839 = vmatprep.mubr.bf16.mxu0 %v1627
        %1840 = vmatmul.mubr.bf16.gmra.mrb[0].mxu0 %v1626
        %v1841 = vpop.f32.mrb[0].mxu0
        %v1842 = vadd.f32 %v1669, %v1841
        %v1843 = vpop.f32.mrb[0].mxu0
        %v1844 = vpop.f32.mrb[0].mxu0
        %v1845 = vadd.f32 %v1669, %v1844
        %v1846 = vpop.f32.mrb[0].mxu0
        %1847 = vmatprep.mubr.bf16.mxu0 %v1629
        %1848 = vmatmul.mubr.bf16.gmra.mrb[0].mxu0 %v1628
        %v1849 = vpop.f32.mrb[0].mxu0
        %v1850 = vadd.f32 %v1669, %v1849
        %v1851 = vpop.f32.mrb[0].mxu0
        %v1852 = vpop.f32.mrb[0].mxu0
        %v1853 = vadd.f32 %v1669, %v1852
        %v1854 = vpop.f32.mrb[0].mxu0
        %1855 = vmatprep.mubr.bf16.mxu0 %v1631
        %1856 = vmatmul.mubr.bf16.gmra.mrb[0].mxu0 %v1630
        %v1857 = vpop.f32.mrb[0].mxu0
        %v1858 = vadd.f32 %v1669, %v1857
        %v1859 = vpop.f32.mrb[0].mxu0
        %v1860 = vpop.f32.mrb[0].mxu0
        %v1861 = vadd.f32 %v1669, %v1860
        %v1862 = vpop.f32.mrb[0].mxu0
        %1863 = vdwg.mxu0
        %v1864 = vadd.f32 %v1339, %v1802
        %v1865 = vadd.f32 %v1340, %v1805
        %v1866 = vadd.f32 %v1341, %v1810
        %v1867 = vadd.f32 %v1342, %v1813
        %v1868 = vadd.f32 %v1343, %v1818
        %v1869 = vadd.f32 %v1344, %v1821
        %v1870 = vadd.f32 %v1345, %v1826
        %v1871 = vadd.f32 %v1346, %v1829
        %v1872 = vadd.f32 %v1347, %v1834
        %v1873 = vadd.f32 %v1348, %v1837
        %v1874 = vadd.f32 %v1349, %v1842
        %v1875 = vadd.f32 %v1350, %v1845
        %v1876 = vadd.f32 %v1351, %v1850
        %v1877 = vadd.f32 %v1352, %v1853
        %v1878 = vadd.f32 %v1353, %v1858
        %v1879 = vadd.f32 %v1354, %v1861
        %v1880 = vld [vmem:[%s9] sm:$0x1]
        %v1881 = vld [vmem:[%s10] sm:$0x1]
        %1882 = vadd.xlane.f32.xlu0 %v1864
        %v1883 = vpop.xlane.xlu0 %1882
        %1884 = vadd.xlane.f32.xlu0 %v1865
        %v1885 = vpop.xlane.xlu0 %1884
        %1886 = vadd.xlane.f32.xlu0 %v1866
        %v1887 = vpop.xlane.xlu0 %1886
        %1888 = vadd.xlane.f32.xlu0 %v1867
        %v1889 = vpop.xlane.xlu0 %1888
        %1890 = vadd.xlane.f32.xlu0 %v1868
        %v1891 = vpop.xlane.xlu0 %1890
        %1892 = vadd.xlane.f32.xlu0 %v1869
        %v1893 = vpop.xlane.xlu0 %1892
        %1894 = vadd.xlane.f32.xlu0 %v1870
        %v1895 = vpop.xlane.xlu0 %1894
        %1896 = vadd.xlane.f32.xlu0 %v1871
        %v1897 = vpop.xlane.xlu0 %1896
        %1898 = vadd.xlane.f32.xlu0 %v1872
        %v1899 = vpop.xlane.xlu0 %1898
        %1900 = vadd.xlane.f32.xlu0 %v1873
        %v1901 = vpop.xlane.xlu0 %1900
        %1902 = vadd.xlane.f32.xlu0 %v1874
        %v1903 = vpop.xlane.xlu0 %1902
        %1904 = vadd.xlane.f32.xlu0 %v1875
        %v1905 = vpop.xlane.xlu0 %1904
        %1906 = vadd.xlane.f32.xlu0 %v1876
        %v1907 = vpop.xlane.xlu0 %1906
        %1908 = vadd.xlane.f32.xlu0 %v1877
        %v1909 = vpop.xlane.xlu0 %1908
        %1910 = vadd.xlane.f32.xlu0 %v1878
        %v1911 = vpop.xlane.xlu0 %1910
        %1912 = vadd.xlane.f32.xlu0 %v1879
        %v1913 = vpop.xlane.xlu0 %1912
        %v1914 = vmul.f32 %v1883, %v1166
        %v1915 = vmul.f32 %v1885, %v1166
        %v1916 = vmul.f32 %v1887, %v1166
        %v1917 = vmul.f32 %v1889, %v1166
        %v1918 = vmul.f32 %v1891, %v1166
        %v1919 = vmul.f32 %v1893, %v1166
        %v1920 = vmul.f32 %v1895, %v1166
        %v1921 = vmul.f32 %v1897, %v1166
        %v1922 = vmul.f32 %v1899, %v1166
        %v1923 = vmul.f32 %v1901, %v1166
        %v1924 = vmul.f32 %v1903, %v1166
        %v1925 = vmul.f32 %v1905, %v1166
        %v1926 = vmul.f32 %v1907, %v1166
        %v1927 = vmul.f32 %v1909, %v1166
        %v1928 = vmul.f32 %v1911, %v1166
        %v1929 = vmul.f32 %v1913, %v1166
        %v1930 = vsub.f32 %v1864, %v1914
        %v1931 = vsub.f32 %v1865, %v1915
        %v1932 = vsub.f32 %v1866, %v1916
        %v1933 = vsub.f32 %v1867, %v1917
        %v1934 = vsub.f32 %v1868, %v1918
        %v1935 = vsub.f32 %v1869, %v1919
        %v1936 = vsub.f32 %v1870, %v1920
        %v1937 = vsub.f32 %v1871, %v1921
        %v1938 = vsub.f32 %v1872, %v1922
        %v1939 = vsub.f32 %v1873, %v1923
        %v1940 = vsub.f32 %v1874, %v1924
        %v1941 = vsub.f32 %v1875, %v1925
        %v1942 = vsub.f32 %v1876, %v1926
        %v1943 = vsub.f32 %v1877, %v1927
        %v1944 = vsub.f32 %v1878, %v1928
        %v1945 = vsub.f32 %v1879, %v1929
        %v1946 = vmul.f32 %v1930, %v1930
        %v1947 = vmul.f32 %v1931, %v1931
        %v1948 = vmul.f32 %v1932, %v1932
        %v1949 = vmul.f32 %v1933, %v1933
        %v1950 = vmul.f32 %v1934, %v1934
        %v1951 = vmul.f32 %v1935, %v1935
        %v1952 = vmul.f32 %v1936, %v1936
        %v1953 = vmul.f32 %v1937, %v1937
        %v1954 = vmul.f32 %v1938, %v1938
        %v1955 = vmul.f32 %v1939, %v1939
        %v1956 = vmul.f32 %v1940, %v1940
        %v1957 = vmul.f32 %v1941, %v1941
        %v1958 = vmul.f32 %v1942, %v1942
        %v1959 = vmul.f32 %v1943, %v1943
        %v1960 = vmul.f32 %v1944, %v1944
        %v1961 = vmul.f32 %v1945, %v1945
        %1962 = vadd.xlane.f32.xlu0 %v1946
        %v1963 = vpop.xlane.xlu0 %1962
        %1964 = vadd.xlane.f32.xlu0 %v1947
        %v1965 = vpop.xlane.xlu0 %1964
        %1966 = vadd.xlane.f32.xlu0 %v1948
        %v1967 = vpop.xlane.xlu0 %1966
        %1968 = vadd.xlane.f32.xlu0 %v1949
        %v1969 = vpop.xlane.xlu0 %1968
        %1970 = vadd.xlane.f32.xlu0 %v1950
        %v1971 = vpop.xlane.xlu0 %1970
        %1972 = vadd.xlane.f32.xlu0 %v1951
        %v1973 = vpop.xlane.xlu0 %1972
        %1974 = vadd.xlane.f32.xlu0 %v1952
        %v1975 = vpop.xlane.xlu0 %1974
        %1976 = vadd.xlane.f32.xlu0 %v1953
        %v1977 = vpop.xlane.xlu0 %1976
        %1978 = vadd.xlane.f32.xlu0 %v1954
        %v1979 = vpop.xlane.xlu0 %1978
        %1980 = vadd.xlane.f32.xlu0 %v1955
        %v1981 = vpop.xlane.xlu0 %1980
        %1982 = vadd.xlane.f32.xlu0 %v1956
        %v1983 = vpop.xlane.xlu0 %1982
        %1984 = vadd.xlane.f32.xlu0 %v1957
        %v1985 = vpop.xlane.xlu0 %1984
        %1986 = vadd.xlane.f32.xlu0 %v1958
        %v1987 = vpop.xlane.xlu0 %1986
        %1988 = vadd.xlane.f32.xlu0 %v1959
        %v1989 = vpop.xlane.xlu0 %1988
        %1990 = vadd.xlane.f32.xlu0 %v1960
        %v1991 = vpop.xlane.xlu0 %1990
        %1992 = vadd.xlane.f32.xlu0 %v1961
        %v1993 = vpop.xlane.xlu0 %1992
        %v1994 = vmul.f32 %v1963, %v1166
        %v1995 = vmul.f32 %v1965, %v1166
        %v1996 = vmul.f32 %v1967, %v1166
        %v1997 = vmul.f32 %v1969, %v1166
        %v1998 = vmul.f32 %v1971, %v1166
        %v1999 = vmul.f32 %v1973, %v1166
        %v2000 = vmul.f32 %v1975, %v1166
        %v2001 = vmul.f32 %v1977, %v1166
        %v2002 = vmul.f32 %v1979, %v1166
        %v2003 = vmul.f32 %v1981, %v1166
        %v2004 = vmul.f32 %v1983, %v1166
        %v2005 = vmul.f32 %v1985, %v1166
        %v2006 = vmul.f32 %v1987, %v1166
        %v2007 = vmul.f32 %v1989, %v1166
        %v2008 = vmul.f32 %v1991, %v1166
        %v2009 = vmul.f32 %v1993, %v1166
        %v2010 = vadd.f32 %v1994, 1e-05
        %v2011 = vadd.f32 %v1995, 1e-05
        %v2012 = vadd.f32 %v1996, 1e-05
        %v2013 = vadd.f32 %v1997, 1e-05
        %v2014 = vadd.f32 %v1998, 1e-05
        %v2015 = vadd.f32 %v1999, 1e-05
        %v2016 = vadd.f32 %v2000, 1e-05
        %v2017 = vadd.f32 %v2001, 1e-05
        %v2018 = vadd.f32 %v2002, 1e-05
        %v2019 = vadd.f32 %v2003, 1e-05
        %v2020 = vadd.f32 %v2004, 1e-05
        %v2021 = vadd.f32 %v2005, 1e-05
        %v2022 = vadd.f32 %v2006, 1e-05
        %v2023 = vadd.f32 %v2007, 1e-05
        %v2024 = vadd.f32 %v2008, 1e-05
        %v2025 = vadd.f32 %v2009, 1e-05
        %v2026 = vrsqrt.pop %v2010
        %v2027 = vrsqrt.pop %v2011
        %v2028 = vrsqrt.pop %v2012
        %v2029 = vrsqrt.pop %v2013
        %v2030 = vrsqrt.pop %v2014
        %v2031 = vrsqrt.pop %v2015
        %v2032 = vrsqrt.pop %v2016
        %v2033 = vrsqrt.pop %v2017
        %v2034 = vrsqrt.pop %v2018
        %v2035 = vrsqrt.pop %v2019
        %v2036 = vrsqrt.pop %v2020
        %v2037 = vrsqrt.pop %v2021
        %v2038 = vrsqrt.pop %v2022
        %v2039 = vrsqrt.pop %v2023
        %v2040 = vrsqrt.pop %v2024
        %v2041 = vrsqrt.pop %v2025
        %v2042 = vmul.f32 %v1930, %v2026
        %v2043 = vmul.f32 %v1931, %v2027
        %v2044 = vmul.f32 %v1932, %v2028
        %v2045 = vmul.f32 %v1933, %v2029
        %v2046 = vmul.f32 %v1934, %v2030
        %v2047 = vmul.f32 %v1935, %v2031
        %v2048 = vmul.f32 %v1936, %v2032
        %v2049 = vmul.f32 %v1937, %v2033
        %v2050 = vmul.f32 %v1938, %v2034
        %v2051 = vmul.f32 %v1939, %v2035
        %v2052 = vmul.f32 %v1940, %v2036
        %v2053 = vmul.f32 %v1941, %v2037
        %v2054 = vmul.f32 %v1942, %v2038
        %v2055 = vmul.f32 %v1943, %v2039
        %v2056 = vmul.f32 %v1944, %v2040
        %v2057 = vmul.f32 %v1945, %v2041
        %v2059 = vlaneseq
        %v2060 = vshrl.u32 %v2059, 7
        %v2061 = vsub.s32 0, %v2060
        %v2062 = vrot.slane %v1880, %v2061
        %v2064 = vmul.f32 %v2042, %v2062
        %v2065 = vmul.f32 %v2043, %v2062
        %v2066 = vmul.f32 %v2044, %v2062
        %v2067 = vmul.f32 %v2045, %v2062
        %v2068 = vmul.f32 %v2046, %v2062
        %v2069 = vmul.f32 %v2047, %v2062
        %v2070 = vmul.f32 %v2048, %v2062
        %v2071 = vmul.f32 %v2049, %v2062
        %v2072 = vmul.f32 %v2050, %v2062
        %v2073 = vmul.f32 %v2051, %v2062
        %v2074 = vmul.f32 %v2052, %v2062
        %v2075 = vmul.f32 %v2053, %v2062
        %v2076 = vmul.f32 %v2054, %v2062
        %v2077 = vmul.f32 %v2055, %v2062
        %v2078 = vmul.f32 %v2056, %v2062
        %v2079 = vmul.f32 %v2057, %v2062
        %v2081 = vlaneseq
        %v2082 = vshrl.u32 %v2081, 7
        %v2083 = vsub.s32 0, %v2082
        %v2084 = vrot.slane %v1881, %v2083
        %v2086 = vadd.f32 %v2064, %v2084
        %v2087 = vadd.f32 %v2065, %v2084
        %v2088 = vadd.f32 %v2066, %v2084
        %v2089 = vadd.f32 %v2067, %v2084
        %v2090 = vadd.f32 %v2068, %v2084
        %v2091 = vadd.f32 %v2069, %v2084
        %v2092 = vadd.f32 %v2070, %v2084
        %v2093 = vadd.f32 %v2071, %v2084
        %v2094 = vadd.f32 %v2072, %v2084
        %v2095 = vadd.f32 %v2073, %v2084
        %v2096 = vadd.f32 %v2074, %v2084
        %v2097 = vadd.f32 %v2075, %v2084
        %v2098 = vadd.f32 %v2076, %v2084
        %v2099 = vadd.f32 %v2077, %v2084
        %v2100 = vadd.f32 %v2078, %v2084
        %v2101 = vadd.f32 %v2079, %v2084
        %2102 = vst [vmem:[%s448] sm:$0xff] %v2086
        %2103 = vst [vmem:[%s448 + $0x8] sm:$0xff] %v2087
        %2104 = vst [vmem:[%s448 + $0x10] sm:$0xff] %v2088
        %2105 = vst [vmem:[%s448 + $0x18] sm:$0xff] %v2089
        %2106 = vst [vmem:[%s448 + $0x20] sm:$0xff] %v2090
        %2107 = vst [vmem:[%s448 + $0x28] sm:$0xff] %v2091
        %2108 = vst [vmem:[%s448 + $0x30] sm:$0xff] %v2092
        %2109 = vst [vmem:[%s448 + $0x38] sm:$0xff] %v2093
        %2110 = vst [vmem:[%s448 + $0x40] sm:$0xff] %v2094
        %2111 = vst [vmem:[%s448 + $0x48] sm:$0xff] %v2095
        %2112 = vst [vmem:[%s448 + $0x50] sm:$0xff] %v2096
        %2113 = vst [vmem:[%s448 + $0x58] sm:$0xff] %v2097
        %2114 = vst [vmem:[%s448 + $0x60] sm:$0xff] %v2098
        %2115 = vst [vmem:[%s448 + $0x68] sm:$0xff] %v2099
        %2116 = vst [vmem:[%s448 + $0x70] sm:$0xff] %v2100
        %2117 = vst [vmem:[%s448 + $0x78] sm:$0xff] %v2101
        %s2118 = sand.u32 %s292, 1
        %s2119 = scalar_lea.sflag [#allocation4], %s2118
        %s2120 = sand.u32 %s292, 1
        %s2121 = smul.addr %s2120, 128
        %s2122 = scalar_lea.vmem [#allocation7], %s2121
        // Predicated region
        $region73: #{fnet_block.1} parent=63 // pred_check
          %p2123 = pneg %p302
        $region74: #{fnet_block.1} parent=63 // pred_check_branch
          %2125 = sbr.rel (%p2123) target = $region76
        $region75: #{fnet_block.1} parent=63 // pred_region
          %s2126 = smul.u32 16, %s34
          %s2128 = ssub.s32 2048, 2048
          %2129 = vsyncadd %s2119, %s2128
          %s2130 = smul.addr %s33, 32
          %s2131 = sadd.s32 %s2126, %s2130
          %s2132 = smul.addr %s2131, 128
          %s2133 = scalar_lea.hbm %s11, %s2132
          %s2134 = sshll.u32 %s2122, 4
          %s2135 = int_to_ptr.vmem [resolvable:$true] %s2134
          %2140 = dma.vmem_to_hbm [thread:$0]  %s2135, 2048, %s2133, %s2119, 128, 128, 8
        $region76: #{fnet_block.1} parent=63 // pred_fallthru
          _
      $region64: #{fnet_block.1} parent=5 // pred_fallthru
        _
      %p2141 = scmp.le.s32.totalorder 2, %s24
      // Predicated region
      $region77: #{fnet_block.1} parent=5 // pred_check
        %p2142 = pneg %p2141
      $region78: #{fnet_block.1} parent=5 // pred_check_branch
        %2144 = sbr.rel (%p2142) target = $region80
      $region79: #{fnet_block.1} parent=5 // pred_region
        %s2145 = ssub.s32 %s24, 2
        // Predicated region
        $region81: #{fnet_block.1} parent=79 // pred_check
          %p2146 = pneg %p308
        $region82: #{fnet_block.1} parent=79 // pred_check_branch
          %2148 = sbr.rel (%p2146) target = $region84
        $region83: #{fnet_block.1} parent=79 // pred_region
          %s2149 = sand.u32 %s293, 1
          %s2150 = scalar_lea.sflag [#allocation4], %s2149
          %s2151 = sand.u32 %s293, 1
          %s2152 = smul.addr %s2151, 128
          %s2153 = scalar_lea.vmem [#allocation7], %s2152
          %2154 = dma.done %s2150, 2048
        $region84: #{fnet_block.1} parent=79 // pred_fallthru
          _
      $region80: #{fnet_block.1} parent=5 // pred_fallthru
        _
    $region6: #{fnet_block.1} parent=1 // loop_footer
      %s28 = sadd.s32 1, %s24
    $region7: #{fnet_block.1} parent=1 // loop_footer_branch
      %23 = sbr.rel target = $region3
    $region8: #{fnet_block.1} parent=1 // loop_exit
      _
    %2155 = vsyncpa [#allocation3], 1
    %s2156 = scalar_lea.sflag [#allocation3], 1
    %2157 = vsyncpa %s2156, 1
    %2158 = vsyncpa [#allocation6], 1
    %2159 = vsyncpa [#allocation4], 1
    %s2160 = scalar_lea.sflag [#allocation4], 1
    %2161 = vsyncpa %s2160, 1

</llo_original>
